<compile_context>
chip_gen: v6e
topology: v6e:2x2x1
jax: 0.10.0
libtpu: 0.0.40
codegen_flags: <defaults>
</compile_context>

<pallas_src>
import functools

import jax
import jax.numpy as jnp
from jax.experimental import pallas as pl
from jax.experimental.pallas import tpu as pltpu


def _csc_kernel(x_ref, wcs_ref, ws_ref, wb_ref, o_ref):
    # x_ref  : (Bt, C_in, H, W)        VMEM  (batch tile of NCHW images)
    # wcs_ref: (C_in, C_out)           SMEM  (w_c - w_s)
    # ws_ref : (C_in, C_out)           SMEM
    # wb_ref : (C_out,)                SMEM
    # o_ref  : (Bt, C_out, H-2, W-2)   VMEM
    x = x_ref[...].astype(jnp.float32)
    Bt, C_in, H, W = x.shape
    C_out, Ho, Wo = o_ref.shape[1], o_ref.shape[2], o_ref.shape[3]

    # Separable 3x3 box sum: sublane-shift adds along H, lane-shift adds along W.
    rowsum = (x[:, :, 0:Ho, :]
              + x[:, :, 1:1 + Ho, :]
              + x[:, :, 2:2 + Ho, :])                     # (Bt, C, Ho, W)
    box = (rowsum[:, :, :, 0:Wo]
           + rowsum[:, :, :, 1:1 + Wo]
           + rowsum[:, :, :, 2:2 + Wo])                   # (Bt, C, Ho, Wo)
    center = x[:, :, 1:1 + Ho, 1:1 + Wo]                  # (Bt, C, Ho, Wo)

    # Slice per-input-channel planes once; reused for every output channel.
    ctr = [center[:, c] for c in range(C_in)]             # each (Bt, Ho, Wo)
    bxs = [box[:, c] for c in range(C_in)]

    # VPU channel contraction with scalar weights read from SMEM.
    # out[b,o] = wb[o] + sum_c ( (w_c-w_s)[c,o]*center[b,c] + w_s[c,o]*box[b,c] )
    for o in range(C_out):
        acc = ctr[0] * wcs_ref[0, o] + bxs[0] * ws_ref[0, o]
        for c in range(1, C_in):
            acc = acc + ctr[c] * wcs_ref[c, o] + bxs[c] * ws_ref[c, o]
        o_ref[:, o, :, :] = (acc + wb_ref[o]).astype(o_ref.dtype)


def _pick_batch_tile(N, C_in, C_out, H, W, Ho, Wo, requested):
    if requested is not None:
        assert N % requested == 0, "batch_tile must divide N"
        return requested
    # Per-image VMEM footprint (input + output, f32, double-buffered by Pallas).
    per_img = 2 * 4 * (C_in * H * W + C_out * Ho * Wo)
    budget = 8 << 20  # stay well under the scoped-VMEM default on all chips
    cap = max(1, budget // max(per_img, 1))
    # Keep at least 2 grid steps (megacore / v7x 2 TCs) when N allows it.
    best = 1
    for bt in range(1, N + 1):
        if N % bt == 0 and bt <= cap and (N // bt >= 2 or N == 1):
            best = bt
    return best


@functools.partial(jax.jit, static_argnames=("batch_tile",))
def _csc_call(I_nchw, w_cs, w_s32, w_b32, batch_tile):
    N, C_in, H, W = I_nchw.shape
    C_out = w_cs.shape[1]
    Ho, Wo = H - 2, W - 2
    bt = batch_tile
    return pl.pallas_call(
        _csc_kernel,
        out_shape=jax.ShapeDtypeStruct((N, C_out, Ho, Wo), I_nchw.dtype),
        grid_spec=pltpu.PrefetchScalarGridSpec(
            num_scalar_prefetch=0,
            grid=(N // bt,),
            in_specs=[
                # bt images per grid step, full spatial extent (last two dims
                # equal the array dims -> (8,128) constraint satisfied).
                pl.BlockSpec((bt, C_in, H, W), lambda b: (b, 0, 0, 0)),
                # Tiny weight tables live in SMEM for scalar-indexed reads.
                pl.BlockSpec(memory_space=pltpu.MemorySpace.SMEM),
                pl.BlockSpec(memory_space=pltpu.MemorySpace.SMEM),
                pl.BlockSpec(memory_space=pltpu.MemorySpace.SMEM),
            ],
            out_specs=pl.BlockSpec((bt, C_out, Ho, Wo),
                                   lambda b: (b, 0, 0, 0)),
        ),
        compiler_params=pltpu.CompilerParams(
            dimension_semantics=("parallel",)),
    )(I_nchw, w_cs, w_s32, w_b32)


def center_surround_convolution(I_nchw, w_c, w_s, w_b, batch_tile=None):
    """I_nchw: (N, C_in, H, W).  Returns (N, C_out, H-2, W-2), NCHW."""
    N, C_in, H, W = I_nchw.shape
    C_in2, C_out = w_c.shape
    assert C_in == C_in2
    assert H >= 3 and W >= 3
    Ho, Wo = H - 2, W - 2
    bt = _pick_batch_tile(N, C_in, C_out, H, W, Ho, Wo, batch_tile)

    # Fold the surround weight into the center weight once, outside the kernel.
    w_cs = (w_c - w_s).astype(jnp.float32)
    w_s32 = w_s.astype(jnp.float32)
    w_b32 = w_b.astype(jnp.float32)
    return _csc_call(I_nchw, w_cs, w_s32, w_b32, bt)


def _reference(I_nchw, w_c, w_s, w_b):
    """Pure-JAX reference (same math, NCHW)."""
    N, C, H, W = I_nchw.shape
    Ho, Wo = H - 2, W - 2
    box = jnp.zeros((N, C, Ho, Wo), jnp.float32)
    for dy in range(3):
        for dx in range(3):
            box = box + I_nchw[:, :, dy:dy + Ho, dx:dx + Wo]
    center = I_nchw[:, :, 1:1 + Ho, 1:1 + Wo]
    ring = box - center
    out = (jnp.einsum('nchw,co->nohw', center, w_c)
           + jnp.einsum('nchw,co->nohw', ring, w_s)
           + w_b[None, :, None, None])
    return out


def _xavier_normal(key, shape, gain=1.0):
    fan_in, fan_out = shape
    std = gain * (2.0 / (fan_in + fan_out)) ** 0.5
    return std * jax.random.normal(key, shape, dtype=jnp.float32)


if __name__ == "__main__":
    key = jax.random.PRNGKey(0)
    k_i, k_c, k_s = jax.random.split(key, 3)

    N, C_in, C_out, H, W = 2, 4, 8, 16, 16

    # Deterministic parameter init matching the module's reset_parameters().
    w_c = _xavier_normal(k_c, (C_in, C_out), gain=1.0)
    w_s = _xavier_normal(k_s, (C_in, C_out), gain=0.125)
    w_b = jnp.zeros((C_out,), jnp.float32)

    I = jax.random.normal(k_i, (N, C_in, H, W), dtype=jnp.float32)

    out = center_surround_convolution(I, w_c, w_s, w_b)
    out = jax.block_until_ready(out)

    ref = _reference(I, w_c, w_s, w_b)
    assert out.shape == (N, C_out, H - 2, W - 2), out.shape
    assert jnp.allclose(out, ref, atol=1e-4, rtol=1e-4), "mismatch vs reference"

    print("KERNEL_OK")
</pallas_src>

<mosaic_0001>
module attributes {stable_mosaic.version = 11 : i64} {
  func.func @_csc_kernel(%arg0: i32, %arg1: memref<1x4x16x16xf32, #tpu.memory_space<vmem>>, %arg2: memref<4x8xf32, #tpu.memory_space<smem>>, %arg3: memref<4x8xf32, #tpu.memory_space<smem>>, %arg4: memref<8xf32, #tpu.memory_space<smem>>, %arg5: memref<1x8x14x14xf32, #tpu.memory_space<vmem>>) attributes {dimension_semantics = [#tpu.dimension_semantics<parallel>], iteration_bounds = array<i64: 2>, scalar_prefetch = 0 : i64, scratch_operands = 0 : i64, tpu.core_type = #tpu.core_type<tc>, window_params = [{transform_indices = @transform_0, window_bounds = array<i64: 1, 4, 16, 16>}, {transform_indices = @transform_1, window_bounds = array<i64: 4, 8>}, {transform_indices = @transform_2, window_bounds = array<i64: 4, 8>}, {transform_indices = @transform_3, window_bounds = array<i64: 8>}, {transform_indices = @transform_4, window_bounds = array<i64: 1, 8, 14, 14>}]} {
    %c0 = arith.constant 0 : index
    %c0_0 = arith.constant 0 : index
    %c0_1 = arith.constant 0 : index
    %c0_2 = arith.constant 0 : index
    %0 = vector.load %arg1[%c0, %c0_0, %c0_1, %c0_2] : memref<1x4x16x16xf32, #tpu.memory_space<vmem>>, vector<1x4x16x16xf32>
    %1 = vector.extract_strided_slice %0 {offsets = [0, 0, 0, 0], sizes = [1, 4, 14, 16], strides = [1, 1, 1, 1]} : vector<1x4x16x16xf32> to vector<1x4x14x16xf32>
    %2 = vector.extract_strided_slice %0 {offsets = [0, 0, 1, 0], sizes = [1, 4, 14, 16], strides = [1, 1, 1, 1]} : vector<1x4x16x16xf32> to vector<1x4x14x16xf32>
    %3 = arith.addf %1, %2 : vector<1x4x14x16xf32>
    %4 = vector.extract_strided_slice %0 {offsets = [0, 0, 2, 0], sizes = [1, 4, 14, 16], strides = [1, 1, 1, 1]} : vector<1x4x16x16xf32> to vector<1x4x14x16xf32>
    %5 = arith.addf %3, %4 : vector<1x4x14x16xf32>
    %6 = vector.extract_strided_slice %5 {offsets = [0, 0, 0, 0], sizes = [1, 4, 14, 14], strides = [1, 1, 1, 1]} : vector<1x4x14x16xf32> to vector<1x4x14x14xf32>
    %7 = vector.extract_strided_slice %5 {offsets = [0, 0, 0, 1], sizes = [1, 4, 14, 14], strides = [1, 1, 1, 1]} : vector<1x4x14x16xf32> to vector<1x4x14x14xf32>
    %8 = arith.addf %6, %7 : vector<1x4x14x14xf32>
    %9 = vector.extract_strided_slice %5 {offsets = [0, 0, 0, 2], sizes = [1, 4, 14, 14], strides = [1, 1, 1, 1]} : vector<1x4x14x16xf32> to vector<1x4x14x14xf32>
    %10 = arith.addf %8, %9 : vector<1x4x14x14xf32>
    %11 = vector.extract_strided_slice %0 {offsets = [0, 0, 1, 1], sizes = [1, 4, 14, 14], strides = [1, 1, 1, 1]} : vector<1x4x16x16xf32> to vector<1x4x14x14xf32>
    %12 = vector.extract_strided_slice %11 {offsets = [0, 0, 0, 0], sizes = [1, 1, 14, 14], strides = [1, 1, 1, 1]} : vector<1x4x14x14xf32> to vector<1x1x14x14xf32>
    %13 = vector.shape_cast %12 : vector<1x1x14x14xf32> to vector<1x14x14xf32>
    %14 = vector.extract_strided_slice %11 {offsets = [0, 1, 0, 0], sizes = [1, 1, 14, 14], strides = [1, 1, 1, 1]} : vector<1x4x14x14xf32> to vector<1x1x14x14xf32>
    %15 = vector.shape_cast %14 : vector<1x1x14x14xf32> to vector<1x14x14xf32>
    %16 = vector.extract_strided_slice %11 {offsets = [0, 2, 0, 0], sizes = [1, 1, 14, 14], strides = [1, 1, 1, 1]} : vector<1x4x14x14xf32> to vector<1x1x14x14xf32>
    %17 = vector.shape_cast %16 : vector<1x1x14x14xf32> to vector<1x14x14xf32>
    %18 = vector.extract_strided_slice %11 {offsets = [0, 3, 0, 0], sizes = [1, 1, 14, 14], strides = [1, 1, 1, 1]} : vector<1x4x14x14xf32> to vector<1x1x14x14xf32>
    %19 = vector.shape_cast %18 : vector<1x1x14x14xf32> to vector<1x14x14xf32>
    %20 = vector.extract_strided_slice %10 {offsets = [0, 0, 0, 0], sizes = [1, 1, 14, 14], strides = [1, 1, 1, 1]} : vector<1x4x14x14xf32> to vector<1x1x14x14xf32>
    %21 = vector.shape_cast %20 : vector<1x1x14x14xf32> to vector<1x14x14xf32>
    %22 = vector.extract_strided_slice %10 {offsets = [0, 1, 0, 0], sizes = [1, 1, 14, 14], strides = [1, 1, 1, 1]} : vector<1x4x14x14xf32> to vector<1x1x14x14xf32>
    %23 = vector.shape_cast %22 : vector<1x1x14x14xf32> to vector<1x14x14xf32>
    %24 = vector.extract_strided_slice %10 {offsets = [0, 2, 0, 0], sizes = [1, 1, 14, 14], strides = [1, 1, 1, 1]} : vector<1x4x14x14xf32> to vector<1x1x14x14xf32>
    %25 = vector.shape_cast %24 : vector<1x1x14x14xf32> to vector<1x14x14xf32>
    %26 = vector.extract_strided_slice %10 {offsets = [0, 3, 0, 0], sizes = [1, 1, 14, 14], strides = [1, 1, 1, 1]} : vector<1x4x14x14xf32> to vector<1x1x14x14xf32>
    %27 = vector.shape_cast %26 : vector<1x1x14x14xf32> to vector<1x14x14xf32>
    %c0_3 = arith.constant 0 : index
    %c0_4 = arith.constant 0 : index
    %28 = memref.load %arg2[%c0_3, %c0_4] : memref<4x8xf32, #tpu.memory_space<smem>>
    %29 = vector.broadcast %28 : f32 to vector<1x14x14xf32>
    %30 = arith.mulf %13, %29 : vector<1x14x14xf32>
    %c0_5 = arith.constant 0 : index
    %c0_6 = arith.constant 0 : index
    %31 = memref.load %arg3[%c0_5, %c0_6] : memref<4x8xf32, #tpu.memory_space<smem>>
    %32 = vector.broadcast %31 : f32 to vector<1x14x14xf32>
    %33 = arith.mulf %21, %32 : vector<1x14x14xf32>
    %34 = arith.addf %30, %33 : vector<1x14x14xf32>
    %c1 = arith.constant 1 : index
    %c0_7 = arith.constant 0 : index
    %35 = memref.load %arg2[%c1, %c0_7] : memref<4x8xf32, #tpu.memory_space<smem>>
    %36 = vector.broadcast %35 : f32 to vector<1x14x14xf32>
    %37 = arith.mulf %15, %36 : vector<1x14x14xf32>
    %38 = arith.addf %34, %37 : vector<1x14x14xf32>
    %c1_8 = arith.constant 1 : index
    %c0_9 = arith.constant 0 : index
    %39 = memref.load %arg3[%c1_8, %c0_9] : memref<4x8xf32, #tpu.memory_space<smem>>
    %40 = vector.broadcast %39 : f32 to vector<1x14x14xf32>
    %41 = arith.mulf %23, %40 : vector<1x14x14xf32>
    %42 = arith.addf %38, %41 : vector<1x14x14xf32>
    %c2 = arith.constant 2 : index
    %c0_10 = arith.constant 0 : index
    %43 = memref.load %arg2[%c2, %c0_10] : memref<4x8xf32, #tpu.memory_space<smem>>
    %44 = vector.broadcast %43 : f32 to vector<1x14x14xf32>
    %45 = arith.mulf %17, %44 : vector<1x14x14xf32>
    %46 = arith.addf %42, %45 : vector<1x14x14xf32>
    %c2_11 = arith.constant 2 : index
    %c0_12 = arith.constant 0 : index
    %47 = memref.load %arg3[%c2_11, %c0_12] : memref<4x8xf32, #tpu.memory_space<smem>>
    %48 = vector.broadcast %47 : f32 to vector<1x14x14xf32>
    %49 = arith.mulf %25, %48 : vector<1x14x14xf32>
    %50 = arith.addf %46, %49 : vector<1x14x14xf32>
    %c3 = arith.constant 3 : index
    %c0_13 = arith.constant 0 : index
    %51 = memref.load %arg2[%c3, %c0_13] : memref<4x8xf32, #tpu.memory_space<smem>>
    %52 = vector.broadcast %51 : f32 to vector<1x14x14xf32>
    %53 = arith.mulf %19, %52 : vector<1x14x14xf32>
    %54 = arith.addf %50, %53 : vector<1x14x14xf32>
    %c3_14 = arith.constant 3 : index
    %c0_15 = arith.constant 0 : index
    %55 = memref.load %arg3[%c3_14, %c0_15] : memref<4x8xf32, #tpu.memory_space<smem>>
    %56 = vector.broadcast %55 : f32 to vector<1x14x14xf32>
    %57 = arith.mulf %27, %56 : vector<1x14x14xf32>
    %58 = arith.addf %54, %57 : vector<1x14x14xf32>
    %c0_16 = arith.constant 0 : index
    %59 = memref.load %arg4[%c0_16] : memref<8xf32, #tpu.memory_space<smem>>
    %60 = vector.broadcast %59 : f32 to vector<1x14x14xf32>
    %61 = arith.addf %58, %60 : vector<1x14x14xf32>
    %c0_17 = arith.constant 0 : index
    %c0_18 = arith.constant 0 : index
    %c0_19 = arith.constant 0 : index
    %c0_20 = arith.constant 0 : index
    %62 = vector.load %arg5[%c0_17, %c0_18, %c0_19, %c0_20] : memref<1x8x14x14xf32, #tpu.memory_space<vmem>>, vector<1x1x14x14xf32>
    %63 = vector.shape_cast %62 : vector<1x1x14x14xf32> to vector<1x14x14xf32>
    %64 = vector.shape_cast %61 : vector<1x14x14xf32> to vector<1x1x14x14xf32>
    tpu.vector_store %arg5[%c0_17, %c0_18, %c0_19, %c0_20], %64 {strides = array<i32>} : memref<1x8x14x14xf32, #tpu.memory_space<vmem>>, vector<1x1x14x14xf32>,
    %c0_21 = arith.constant 0 : index
    %c1_22 = arith.constant 1 : index
    %65 = memref.load %arg2[%c0_21, %c1_22] : memref<4x8xf32, #tpu.memory_space<smem>>
    %66 = vector.broadcast %65 : f32 to vector<1x14x14xf32>
    %67 = arith.mulf %13, %66 : vector<1x14x14xf32>
    %c0_23 = arith.constant 0 : index
    %c1_24 = arith.constant 1 : index
    %68 = memref.load %arg3[%c0_23, %c1_24] : memref<4x8xf32, #tpu.memory_space<smem>>
    %69 = vector.broadcast %68 : f32 to vector<1x14x14xf32>
    %70 = arith.mulf %21, %69 : vector<1x14x14xf32>
    %71 = arith.addf %67, %70 : vector<1x14x14xf32>
    %c1_25 = arith.constant 1 : index
    %c1_26 = arith.constant 1 : index
    %72 = memref.load %arg2[%c1_25, %c1_26] : memref<4x8xf32, #tpu.memory_space<smem>>
    %73 = vector.broadcast %72 : f32 to vector<1x14x14xf32>
    %74 = arith.mulf %15, %73 : vector<1x14x14xf32>
    %75 = arith.addf %71, %74 : vector<1x14x14xf32>
    %c1_27 = arith.constant 1 : index
    %c1_28 = arith.constant 1 : index
    %76 = memref.load %arg3[%c1_27, %c1_28] : memref<4x8xf32, #tpu.memory_space<smem>>
    %77 = vector.broadcast %76 : f32 to vector<1x14x14xf32>
    %78 = arith.mulf %23, %77 : vector<1x14x14xf32>
    %79 = arith.addf %75, %78 : vector<1x14x14xf32>
    %c2_29 = arith.constant 2 : index
    %c1_30 = arith.constant 1 : index
    %80 = memref.load %arg2[%c2_29, %c1_30] : memref<4x8xf32, #tpu.memory_space<smem>>
    %81 = vector.broadcast %80 : f32 to vector<1x14x14xf32>
    %82 = arith.mulf %17, %81 : vector<1x14x14xf32>
    %83 = arith.addf %79, %82 : vector<1x14x14xf32>
    %c2_31 = arith.constant 2 : index
    %c1_32 = arith.constant 1 : index
    %84 = memref.load %arg3[%c2_31, %c1_32] : memref<4x8xf32, #tpu.memory_space<smem>>
    %85 = vector.broadcast %84 : f32 to vector<1x14x14xf32>
    %86 = arith.mulf %25, %85 : vector<1x14x14xf32>
    %87 = arith.addf %83, %86 : vector<1x14x14xf32>
    %c3_33 = arith.constant 3 : index
    %c1_34 = arith.constant 1 : index
    %88 = memref.load %arg2[%c3_33, %c1_34] : memref<4x8xf32, #tpu.memory_space<smem>>
    %89 = vector.broadcast %88 : f32 to vector<1x14x14xf32>
    %90 = arith.mulf %19, %89 : vector<1x14x14xf32>
    %91 = arith.addf %87, %90 : vector<1x14x14xf32>
    %c3_35 = arith.constant 3 : index
    %c1_36 = arith.constant 1 : index
    %92 = memref.load %arg3[%c3_35, %c1_36] : memref<4x8xf32, #tpu.memory_space<smem>>
    %93 = vector.broadcast %92 : f32 to vector<1x14x14xf32>
    %94 = arith.mulf %27, %93 : vector<1x14x14xf32>
    %95 = arith.addf %91, %94 : vector<1x14x14xf32>
    %c1_37 = arith.constant 1 : index
    %96 = memref.load %arg4[%c1_37] : memref<8xf32, #tpu.memory_space<smem>>
    %97 = vector.broadcast %96 : f32 to vector<1x14x14xf32>
    %98 = arith.addf %95, %97 : vector<1x14x14xf32>
    %c0_38 = arith.constant 0 : index
    %c1_39 = arith.constant 1 : index
    %c0_40 = arith.constant 0 : index
    %c0_41 = arith.constant 0 : index
    %99 = vector.load %arg5[%c0_38, %c1_39, %c0_40, %c0_41] : memref<1x8x14x14xf32, #tpu.memory_space<vmem>>, vector<1x1x14x14xf32>
    %100 = vector.shape_cast %99 : vector<1x1x14x14xf32> to vector<1x14x14xf32>
    %101 = vector.shape_cast %98 : vector<1x14x14xf32> to vector<1x1x14x14xf32>
    tpu.vector_store %arg5[%c0_38, %c1_39, %c0_40, %c0_41], %101 {strides = array<i32>} : memref<1x8x14x14xf32, #tpu.memory_space<vmem>>, vector<1x1x14x14xf32>,
    %c0_42 = arith.constant 0 : index
    %c2_43 = arith.constant 2 : index
    %102 = memref.load %arg2[%c0_42, %c2_43] : memref<4x8xf32, #tpu.memory_space<smem>>
    %103 = vector.broadcast %102 : f32 to vector<1x14x14xf32>
    %104 = arith.mulf %13, %103 : vector<1x14x14xf32>
    %c0_44 = arith.constant 0 : index
    %c2_45 = arith.constant 2 : index
    %105 = memref.load %arg3[%c0_44, %c2_45] : memref<4x8xf32, #tpu.memory_space<smem>>
    %106 = vector.broadcast %105 : f32 to vector<1x14x14xf32>
    %107 = arith.mulf %21, %106 : vector<1x14x14xf32>
    %108 = arith.addf %104, %107 : vector<1x14x14xf32>
    %c1_46 = arith.constant 1 : index
    %c2_47 = arith.constant 2 : index
    %109 = memref.load %arg2[%c1_46, %c2_47] : memref<4x8xf32, #tpu.memory_space<smem>>
    %110 = vector.broadcast %109 : f32 to vector<1x14x14xf32>
    %111 = arith.mulf %15, %110 : vector<1x14x14xf32>
    %112 = arith.addf %108, %111 : vector<1x14x14xf32>
    %c1_48 = arith.constant 1 : index
    %c2_49 = arith.constant 2 : index
    %113 = memref.load %arg3[%c1_48, %c2_49] : memref<4x8xf32, #tpu.memory_space<smem>>
    %114 = vector.broadcast %113 : f32 to vector<1x14x14xf32>
    %115 = arith.mulf %23, %114 : vector<1x14x14xf32>
    %116 = arith.addf %112, %115 : vector<1x14x14xf32>
    %c2_50 = arith.constant 2 : index
    %c2_51 = arith.constant 2 : index
    %117 = memref.load %arg2[%c2_50, %c2_51] : memref<4x8xf32, #tpu.memory_space<smem>>
    %118 = vector.broadcast %117 : f32 to vector<1x14x14xf32>
    %119 = arith.mulf %17, %118 : vector<1x14x14xf32>
    %120 = arith.addf %116, %119 : vector<1x14x14xf32>
    %c2_52 = arith.constant 2 : index
    %c2_53 = arith.constant 2 : index
    %121 = memref.load %arg3[%c2_52, %c2_53] : memref<4x8xf32, #tpu.memory_space<smem>>
    %122 = vector.broadcast %121 : f32 to vector<1x14x14xf32>
    %123 = arith.mulf %25, %122 : vector<1x14x14xf32>
    %124 = arith.addf %120, %123 : vector<1x14x14xf32>
    %c3_54 = arith.constant 3 : index
    %c2_55 = arith.constant 2 : index
    %125 = memref.load %arg2[%c3_54, %c2_55] : memref<4x8xf32, #tpu.memory_space<smem>>
    %126 = vector.broadcast %125 : f32 to vector<1x14x14xf32>
    %127 = arith.mulf %19, %126 : vector<1x14x14xf32>
    %128 = arith.addf %124, %127 : vector<1x14x14xf32>
    %c3_56 = arith.constant 3 : index
    %c2_57 = arith.constant 2 : index
    %129 = memref.load %arg3[%c3_56, %c2_57] : memref<4x8xf32, #tpu.memory_space<smem>>
    %130 = vector.broadcast %129 : f32 to vector<1x14x14xf32>
    %131 = arith.mulf %27, %130 : vector<1x14x14xf32>
    %132 = arith.addf %128, %131 : vector<1x14x14xf32>
    %c2_58 = arith.constant 2 : index
    %133 = memref.load %arg4[%c2_58] : memref<8xf32, #tpu.memory_space<smem>>
    %134 = vector.broadcast %133 : f32 to vector<1x14x14xf32>
    %135 = arith.addf %132, %134 : vector<1x14x14xf32>
    %c0_59 = arith.constant 0 : index
    %c2_60 = arith.constant 2 : index
    %c0_61 = arith.constant 0 : index
    %c0_62 = arith.constant 0 : index
    %136 = vector.load %arg5[%c0_59, %c2_60, %c0_61, %c0_62] : memref<1x8x14x14xf32, #tpu.memory_space<vmem>>, vector<1x1x14x14xf32>
    %137 = vector.shape_cast %136 : vector<1x1x14x14xf32> to vector<1x14x14xf32>
    %138 = vector.shape_cast %135 : vector<1x14x14xf32> to vector<1x1x14x14xf32>
    tpu.vector_store %arg5[%c0_59, %c2_60, %c0_61, %c0_62], %138 {strides = array<i32>} : memref<1x8x14x14xf32, #tpu.memory_space<vmem>>, vector<1x1x14x14xf32>,
    %c0_63 = arith.constant 0 : index
    %c3_64 = arith.constant 3 : index
    %139 = memref.load %arg2[%c0_63, %c3_64] : memref<4x8xf32, #tpu.memory_space<smem>>
    %140 = vector.broadcast %139 : f32 to vector<1x14x14xf32>
    %141 = arith.mulf %13, %140 : vector<1x14x14xf32>
    %c0_65 = arith.constant 0 : index
    %c3_66 = arith.constant 3 : index
    %142 = memref.load %arg3[%c0_65, %c3_66] : memref<4x8xf32, #tpu.memory_space<smem>>
    %143 = vector.broadcast %142 : f32 to vector<1x14x14xf32>
    %144 = arith.mulf %21, %143 : vector<1x14x14xf32>
    %145 = arith.addf %141, %144 : vector<1x14x14xf32>
    %c1_67 = arith.constant 1 : index
    %c3_68 = arith.constant 3 : index
    %146 = memref.load %arg2[%c1_67, %c3_68] : memref<4x8xf32, #tpu.memory_space<smem>>
    %147 = vector.broadcast %146 : f32 to vector<1x14x14xf32>
    %148 = arith.mulf %15, %147 : vector<1x14x14xf32>
    %149 = arith.addf %145, %148 : vector<1x14x14xf32>
    %c1_69 = arith.constant 1 : index
    %c3_70 = arith.constant 3 : index
    %150 = memref.load %arg3[%c1_69, %c3_70] : memref<4x8xf32, #tpu.memory_space<smem>>
    %151 = vector.broadcast %150 : f32 to vector<1x14x14xf32>
    %152 = arith.mulf %23, %151 : vector<1x14x14xf32>
    %153 = arith.addf %149, %152 : vector<1x14x14xf32>
    %c2_71 = arith.constant 2 : index
    %c3_72 = arith.constant 3 : index
    %154 = memref.load %arg2[%c2_71, %c3_72] : memref<4x8xf32, #tpu.memory_space<smem>>
    %155 = vector.broadcast %154 : f32 to vector<1x14x14xf32>
    %156 = arith.mulf %17, %155 : vector<1x14x14xf32>
    %157 = arith.addf %153, %156 : vector<1x14x14xf32>
    %c2_73 = arith.constant 2 : index
    %c3_74 = arith.constant 3 : index
    %158 = memref.load %arg3[%c2_73, %c3_74] : memref<4x8xf32, #tpu.memory_space<smem>>
    %159 = vector.broadcast %158 : f32 to vector<1x14x14xf32>
    %160 = arith.mulf %25, %159 : vector<1x14x14xf32>
    %161 = arith.addf %157, %160 : vector<1x14x14xf32>
    %c3_75 = arith.constant 3 : index
    %c3_76 = arith.constant 3 : index
    %162 = memref.load %arg2[%c3_75, %c3_76] : memref<4x8xf32, #tpu.memory_space<smem>>
    %163 = vector.broadcast %162 : f32 to vector<1x14x14xf32>
    %164 = arith.mulf %19, %163 : vector<1x14x14xf32>
    %165 = arith.addf %161, %164 : vector<1x14x14xf32>
    %c3_77 = arith.constant 3 : index
    %c3_78 = arith.constant 3 : index
    %166 = memref.load %arg3[%c3_77, %c3_78] : memref<4x8xf32, #tpu.memory_space<smem>>
    %167 = vector.broadcast %166 : f32 to vector<1x14x14xf32>
    %168 = arith.mulf %27, %167 : vector<1x14x14xf32>
    %169 = arith.addf %165, %168 : vector<1x14x14xf32>
    %c3_79 = arith.constant 3 : index
    %170 = memref.load %arg4[%c3_79] : memref<8xf32, #tpu.memory_space<smem>>
    %171 = vector.broadcast %170 : f32 to vector<1x14x14xf32>
    %172 = arith.addf %169, %171 : vector<1x14x14xf32>
    %c0_80 = arith.constant 0 : index
    %c3_81 = arith.constant 3 : index
    %c0_82 = arith.constant 0 : index
    %c0_83 = arith.constant 0 : index
    %173 = vector.load %arg5[%c0_80, %c3_81, %c0_82, %c0_83] : memref<1x8x14x14xf32, #tpu.memory_space<vmem>>, vector<1x1x14x14xf32>
    %174 = vector.shape_cast %173 : vector<1x1x14x14xf32> to vector<1x14x14xf32>
    %175 = vector.shape_cast %172 : vector<1x14x14xf32> to vector<1x1x14x14xf32>
    tpu.vector_store %arg5[%c0_80, %c3_81, %c0_82, %c0_83], %175 {strides = array<i32>} : memref<1x8x14x14xf32, #tpu.memory_space<vmem>>, vector<1x1x14x14xf32>,
    %c0_84 = arith.constant 0 : index
    %c4 = arith.constant 4 : index
    %176 = memref.load %arg2[%c0_84, %c4] : memref<4x8xf32, #tpu.memory_space<smem>>
    %177 = vector.broadcast %176 : f32 to vector<1x14x14xf32>
    %178 = arith.mulf %13, %177 : vector<1x14x14xf32>
    %c0_85 = arith.constant 0 : index
    %c4_86 = arith.constant 4 : index
    %179 = memref.load %arg3[%c0_85, %c4_86] : memref<4x8xf32, #tpu.memory_space<smem>>
    %180 = vector.broadcast %179 : f32 to vector<1x14x14xf32>
    %181 = arith.mulf %21, %180 : vector<1x14x14xf32>
    %182 = arith.addf %178, %181 : vector<1x14x14xf32>
    %c1_87 = arith.constant 1 : index
    %c4_88 = arith.constant 4 : index
    %183 = memref.load %arg2[%c1_87, %c4_88] : memref<4x8xf32, #tpu.memory_space<smem>>
    %184 = vector.broadcast %183 : f32 to vector<1x14x14xf32>
    %185 = arith.mulf %15, %184 : vector<1x14x14xf32>
    %186 = arith.addf %182, %185 : vector<1x14x14xf32>
    %c1_89 = arith.constant 1 : index
    %c4_90 = arith.constant 4 : index
    %187 = memref.load %arg3[%c1_89, %c4_90] : memref<4x8xf32, #tpu.memory_space<smem>>
    %188 = vector.broadcast %187 : f32 to vector<1x14x14xf32>
    %189 = arith.mulf %23, %188 : vector<1x14x14xf32>
    %190 = arith.addf %186, %189 : vector<1x14x14xf32>
    %c2_91 = arith.constant 2 : index
    %c4_92 = arith.constant 4 : index
    %191 = memref.load %arg2[%c2_91, %c4_92] : memref<4x8xf32, #tpu.memory_space<smem>>
    %192 = vector.broadcast %191 : f32 to vector<1x14x14xf32>
    %193 = arith.mulf %17, %192 : vector<1x14x14xf32>
    %194 = arith.addf %190, %193 : vector<1x14x14xf32>
    %c2_93 = arith.constant 2 : index
    %c4_94 = arith.constant 4 : index
    %195 = memref.load %arg3[%c2_93, %c4_94] : memref<4x8xf32, #tpu.memory_space<smem>>
    %196 = vector.broadcast %195 : f32 to vector<1x14x14xf32>
    %197 = arith.mulf %25, %196 : vector<1x14x14xf32>
    %198 = arith.addf %194, %197 : vector<1x14x14xf32>
    %c3_95 = arith.constant 3 : index
    %c4_96 = arith.constant 4 : index
    %199 = memref.load %arg2[%c3_95, %c4_96] : memref<4x8xf32, #tpu.memory_space<smem>>
    %200 = vector.broadcast %199 : f32 to vector<1x14x14xf32>
    %201 = arith.mulf %19, %200 : vector<1x14x14xf32>
    %202 = arith.addf %198, %201 : vector<1x14x14xf32>
    %c3_97 = arith.constant 3 : index
    %c4_98 = arith.constant 4 : index
    %203 = memref.load %arg3[%c3_97, %c4_98] : memref<4x8xf32, #tpu.memory_space<smem>>
    %204 = vector.broadcast %203 : f32 to vector<1x14x14xf32>
    %205 = arith.mulf %27, %204 : vector<1x14x14xf32>
    %206 = arith.addf %202, %205 : vector<1x14x14xf32>
    %c4_99 = arith.constant 4 : index
    %207 = memref.load %arg4[%c4_99] : memref<8xf32, #tpu.memory_space<smem>>
    %208 = vector.broadcast %207 : f32 to vector<1x14x14xf32>
    %209 = arith.addf %206, %208 : vector<1x14x14xf32>
    %c0_100 = arith.constant 0 : index
    %c4_101 = arith.constant 4 : index
    %c0_102 = arith.constant 0 : index
    %c0_103 = arith.constant 0 : index
    %210 = vector.load %arg5[%c0_100, %c4_101, %c0_102, %c0_103] : memref<1x8x14x14xf32, #tpu.memory_space<vmem>>, vector<1x1x14x14xf32>
    %211 = vector.shape_cast %210 : vector<1x1x14x14xf32> to vector<1x14x14xf32>
    %212 = vector.shape_cast %209 : vector<1x14x14xf32> to vector<1x1x14x14xf32>
    tpu.vector_store %arg5[%c0_100, %c4_101, %c0_102, %c0_103], %212 {strides = array<i32>} : memref<1x8x14x14xf32, #tpu.memory_space<vmem>>, vector<1x1x14x14xf32>,
    %c0_104 = arith.constant 0 : index
    %c5 = arith.constant 5 : index
    %213 = memref.load %arg2[%c0_104, %c5] : memref<4x8xf32, #tpu.memory_space<smem>>
    %214 = vector.broadcast %213 : f32 to vector<1x14x14xf32>
    %215 = arith.mulf %13, %214 : vector<1x14x14xf32>
    %c0_105 = arith.constant 0 : index
    %c5_106 = arith.constant 5 : index
    %216 = memref.load %arg3[%c0_105, %c5_106] : memref<4x8xf32, #tpu.memory_space<smem>>
    %217 = vector.broadcast %216 : f32 to vector<1x14x14xf32>
    %218 = arith.mulf %21, %217 : vector<1x14x14xf32>
    %219 = arith.addf %215, %218 : vector<1x14x14xf32>
    %c1_107 = arith.constant 1 : index
    %c5_108 = arith.constant 5 : index
    %220 = memref.load %arg2[%c1_107, %c5_108] : memref<4x8xf32, #tpu.memory_space<smem>>
    %221 = vector.broadcast %220 : f32 to vector<1x14x14xf32>
    %222 = arith.mulf %15, %221 : vector<1x14x14xf32>
    %223 = arith.addf %219, %222 : vector<1x14x14xf32>
    %c1_109 = arith.constant 1 : index
    %c5_110 = arith.constant 5 : index
    %224 = memref.load %arg3[%c1_109, %c5_110] : memref<4x8xf32, #tpu.memory_space<smem>>
    %225 = vector.broadcast %224 : f32 to vector<1x14x14xf32>
    %226 = arith.mulf %23, %225 : vector<1x14x14xf32>
    %227 = arith.addf %223, %226 : vector<1x14x14xf32>
    %c2_111 = arith.constant 2 : index
    %c5_112 = arith.constant 5 : index
    %228 = memref.load %arg2[%c2_111, %c5_112] : memref<4x8xf32, #tpu.memory_space<smem>>
    %229 = vector.broadcast %228 : f32 to vector<1x14x14xf32>
    %230 = arith.mulf %17, %229 : vector<1x14x14xf32>
    %231 = arith.addf %227, %230 : vector<1x14x14xf32>
    %c2_113 = arith.constant 2 : index
    %c5_114 = arith.constant 5 : index
    %232 = memref.load %arg3[%c2_113, %c5_114] : memref<4x8xf32, #tpu.memory_space<smem>>
    %233 = vector.broadcast %232 : f32 to vector<1x14x14xf32>
    %234 = arith.mulf %25, %233 : vector<1x14x14xf32>
    %235 = arith.addf %231, %234 : vector<1x14x14xf32>
    %c3_115 = arith.constant 3 : index
    %c5_116 = arith.constant 5 : index
    %236 = memref.load %arg2[%c3_115, %c5_116] : memref<4x8xf32, #tpu.memory_space<smem>>
    %237 = vector.broadcast %236 : f32 to vector<1x14x14xf32>
    %238 = arith.mulf %19, %237 : vector<1x14x14xf32>
    %239 = arith.addf %235, %238 : vector<1x14x14xf32>
    %c3_117 = arith.constant 3 : index
    %c5_118 = arith.constant 5 : index
    %240 = memref.load %arg3[%c3_117, %c5_118] : memref<4x8xf32, #tpu.memory_space<smem>>
    %241 = vector.broadcast %240 : f32 to vector<1x14x14xf32>
    %242 = arith.mulf %27, %241 : vector<1x14x14xf32>
    %243 = arith.addf %239, %242 : vector<1x14x14xf32>
    %c5_119 = arith.constant 5 : index
    %244 = memref.load %arg4[%c5_119] : memref<8xf32, #tpu.memory_space<smem>>
    %245 = vector.broadcast %244 : f32 to vector<1x14x14xf32>
    %246 = arith.addf %243, %245 : vector<1x14x14xf32>
    %c0_120 = arith.constant 0 : index
    %c5_121 = arith.constant 5 : index
    %c0_122 = arith.constant 0 : index
    %c0_123 = arith.constant 0 : index
    %247 = vector.load %arg5[%c0_120, %c5_121, %c0_122, %c0_123] : memref<1x8x14x14xf32, #tpu.memory_space<vmem>>, vector<1x1x14x14xf32>
    %248 = vector.shape_cast %247 : vector<1x1x14x14xf32> to vector<1x14x14xf32>
    %249 = vector.shape_cast %246 : vector<1x14x14xf32> to vector<1x1x14x14xf32>
    tpu.vector_store %arg5[%c0_120, %c5_121, %c0_122, %c0_123], %249 {strides = array<i32>} : memref<1x8x14x14xf32, #tpu.memory_space<vmem>>, vector<1x1x14x14xf32>,
    %c0_124 = arith.constant 0 : index
    %c6 = arith.constant 6 : index
    %250 = memref.load %arg2[%c0_124, %c6] : memref<4x8xf32, #tpu.memory_space<smem>>
    %251 = vector.broadcast %250 : f32 to vector<1x14x14xf32>
    %252 = arith.mulf %13, %251 : vector<1x14x14xf32>
    %c0_125 = arith.constant 0 : index
    %c6_126 = arith.constant 6 : index
    %253 = memref.load %arg3[%c0_125, %c6_126] : memref<4x8xf32, #tpu.memory_space<smem>>
    %254 = vector.broadcast %253 : f32 to vector<1x14x14xf32>
    %255 = arith.mulf %21, %254 : vector<1x14x14xf32>
    %256 = arith.addf %252, %255 : vector<1x14x14xf32>
    %c1_127 = arith.constant 1 : index
    %c6_128 = arith.constant 6 : index
    %257 = memref.load %arg2[%c1_127, %c6_128] : memref<4x8xf32, #tpu.memory_space<smem>>
    %258 = vector.broadcast %257 : f32 to vector<1x14x14xf32>
    %259 = arith.mulf %15, %258 : vector<1x14x14xf32>
    %260 = arith.addf %256, %259 : vector<1x14x14xf32>
    %c1_129 = arith.constant 1 : index
    %c6_130 = arith.constant 6 : index
    %261 = memref.load %arg3[%c1_129, %c6_130] : memref<4x8xf32, #tpu.memory_space<smem>>
    %262 = vector.broadcast %261 : f32 to vector<1x14x14xf32>
    %263 = arith.mulf %23, %262 : vector<1x14x14xf32>
    %264 = arith.addf %260, %263 : vector<1x14x14xf32>
    %c2_131 = arith.constant 2 : index
    %c6_132 = arith.constant 6 : index
    %265 = memref.load %arg2[%c2_131, %c6_132] : memref<4x8xf32, #tpu.memory_space<smem>>
    %266 = vector.broadcast %265 : f32 to vector<1x14x14xf32>
    %267 = arith.mulf %17, %266 : vector<1x14x14xf32>
    %268 = arith.addf %264, %267 : vector<1x14x14xf32>
    %c2_133 = arith.constant 2 : index
    %c6_134 = arith.constant 6 : index
    %269 = memref.load %arg3[%c2_133, %c6_134] : memref<4x8xf32, #tpu.memory_space<smem>>
    %270 = vector.broadcast %269 : f32 to vector<1x14x14xf32>
    %271 = arith.mulf %25, %270 : vector<1x14x14xf32>
    %272 = arith.addf %268, %271 : vector<1x14x14xf32>
    %c3_135 = arith.constant 3 : index
    %c6_136 = arith.constant 6 : index
    %273 = memref.load %arg2[%c3_135, %c6_136] : memref<4x8xf32, #tpu.memory_space<smem>>
    %274 = vector.broadcast %273 : f32 to vector<1x14x14xf32>
    %275 = arith.mulf %19, %274 : vector<1x14x14xf32>
    %276 = arith.addf %272, %275 : vector<1x14x14xf32>
    %c3_137 = arith.constant 3 : index
    %c6_138 = arith.constant 6 : index
    %277 = memref.load %arg3[%c3_137, %c6_138] : memref<4x8xf32, #tpu.memory_space<smem>>
    %278 = vector.broadcast %277 : f32 to vector<1x14x14xf32>
    %279 = arith.mulf %27, %278 : vector<1x14x14xf32>
    %280 = arith.addf %276, %279 : vector<1x14x14xf32>
    %c6_139 = arith.constant 6 : index
    %281 = memref.load %arg4[%c6_139] : memref<8xf32, #tpu.memory_space<smem>>
    %282 = vector.broadcast %281 : f32 to vector<1x14x14xf32>
    %283 = arith.addf %280, %282 : vector<1x14x14xf32>
    %c0_140 = arith.constant 0 : index
    %c6_141 = arith.constant 6 : index
    %c0_142 = arith.constant 0 : index
    %c0_143 = arith.constant 0 : index
    %284 = vector.load %arg5[%c0_140, %c6_141, %c0_142, %c0_143] : memref<1x8x14x14xf32, #tpu.memory_space<vmem>>, vector<1x1x14x14xf32>
    %285 = vector.shape_cast %284 : vector<1x1x14x14xf32> to vector<1x14x14xf32>
    %286 = vector.shape_cast %283 : vector<1x14x14xf32> to vector<1x1x14x14xf32>
    tpu.vector_store %arg5[%c0_140, %c6_141, %c0_142, %c0_143], %286 {strides = array<i32>} : memref<1x8x14x14xf32, #tpu.memory_space<vmem>>, vector<1x1x14x14xf32>,
    %c0_144 = arith.constant 0 : index
    %c7 = arith.constant 7 : index
    %287 = memref.load %arg2[%c0_144, %c7] : memref<4x8xf32, #tpu.memory_space<smem>>
    %288 = vector.broadcast %287 : f32 to vector<1x14x14xf32>
    %289 = arith.mulf %13, %288 : vector<1x14x14xf32>
    %c0_145 = arith.constant 0 : index
    %c7_146 = arith.constant 7 : index
    %290 = memref.load %arg3[%c0_145, %c7_146] : memref<4x8xf32, #tpu.memory_space<smem>>
    %291 = vector.broadcast %290 : f32 to vector<1x14x14xf32>
    %292 = arith.mulf %21, %291 : vector<1x14x14xf32>
    %293 = arith.addf %289, %292 : vector<1x14x14xf32>
    %c1_147 = arith.constant 1 : index
    %c7_148 = arith.constant 7 : index
    %294 = memref.load %arg2[%c1_147, %c7_148] : memref<4x8xf32, #tpu.memory_space<smem>>
    %295 = vector.broadcast %294 : f32 to vector<1x14x14xf32>
    %296 = arith.mulf %15, %295 : vector<1x14x14xf32>
    %297 = arith.addf %293, %296 : vector<1x14x14xf32>
    %c1_149 = arith.constant 1 : index
    %c7_150 = arith.constant 7 : index
    %298 = memref.load %arg3[%c1_149, %c7_150] : memref<4x8xf32, #tpu.memory_space<smem>>
    %299 = vector.broadcast %298 : f32 to vector<1x14x14xf32>
    %300 = arith.mulf %23, %299 : vector<1x14x14xf32>
    %301 = arith.addf %297, %300 : vector<1x14x14xf32>
    %c2_151 = arith.constant 2 : index
    %c7_152 = arith.constant 7 : index
    %302 = memref.load %arg2[%c2_151, %c7_152] : memref<4x8xf32, #tpu.memory_space<smem>>
    %303 = vector.broadcast %302 : f32 to vector<1x14x14xf32>
    %304 = arith.mulf %17, %303 : vector<1x14x14xf32>
    %305 = arith.addf %301, %304 : vector<1x14x14xf32>
    %c2_153 = arith.constant 2 : index
    %c7_154 = arith.constant 7 : index
    %306 = memref.load %arg3[%c2_153, %c7_154] : memref<4x8xf32, #tpu.memory_space<smem>>
    %307 = vector.broadcast %306 : f32 to vector<1x14x14xf32>
    %308 = arith.mulf %25, %307 : vector<1x14x14xf32>
    %309 = arith.addf %305, %308 : vector<1x14x14xf32>
    %c3_155 = arith.constant 3 : index
    %c7_156 = arith.constant 7 : index
    %310 = memref.load %arg2[%c3_155, %c7_156] : memref<4x8xf32, #tpu.memory_space<smem>>
    %311 = vector.broadcast %310 : f32 to vector<1x14x14xf32>
    %312 = arith.mulf %19, %311 : vector<1x14x14xf32>
    %313 = arith.addf %309, %312 : vector<1x14x14xf32>
    %c3_157 = arith.constant 3 : index
    %c7_158 = arith.constant 7 : index
    %314 = memref.load %arg3[%c3_157, %c7_158] : memref<4x8xf32, #tpu.memory_space<smem>>
    %315 = vector.broadcast %314 : f32 to vector<1x14x14xf32>
    %316 = arith.mulf %27, %315 : vector<1x14x14xf32>
    %317 = arith.addf %313, %316 : vector<1x14x14xf32>
    %c7_159 = arith.constant 7 : index
    %318 = memref.load %arg4[%c7_159] : memref<8xf32, #tpu.memory_space<smem>>
    %319 = vector.broadcast %318 : f32 to vector<1x14x14xf32>
    %320 = arith.addf %317, %319 : vector<1x14x14xf32>
    %c0_160 = arith.constant 0 : index
    %c7_161 = arith.constant 7 : index
    %c0_162 = arith.constant 0 : index
    %c0_163 = arith.constant 0 : index
    %321 = vector.load %arg5[%c0_160, %c7_161, %c0_162, %c0_163] : memref<1x8x14x14xf32, #tpu.memory_space<vmem>>, vector<1x1x14x14xf32>
    %322 = vector.shape_cast %321 : vector<1x1x14x14xf32> to vector<1x14x14xf32>
    %323 = vector.shape_cast %320 : vector<1x14x14xf32> to vector<1x1x14x14xf32>
    tpu.vector_store %arg5[%c0_160, %c7_161, %c0_162, %c0_163], %323 {strides = array<i32>} : memref<1x8x14x14xf32, #tpu.memory_space<vmem>>, vector<1x1x14x14xf32>,
    return
  }
  func.func @transform_0(%arg0: i32) -> (i32, i32, i32, i32) {
    %c0_i32 = arith.constant 0 : i32
    %c0_i32_0 = arith.constant 0 : i32
    %c0_i32_1 = arith.constant 0 : i32
    %c0_i32_2 = arith.constant 0 : i32
    return %arg0, %c0_i32, %c0_i32_0, %c0_i32_1 : i32, i32, i32, i32
  }
  func.func @transform_1(%arg0: i32) -> (i32, i32) {
    %c0_i32 = arith.constant 0 : i32
    %c0_i32_0 = arith.constant 0 : i32
    %c0_i32_1 = arith.constant 0 : i32
    return %c0_i32, %c0_i32_0 : i32, i32
  }
  func.func @transform_2(%arg0: i32) -> (i32, i32) {
    %c0_i32 = arith.constant 0 : i32
    %c0_i32_0 = arith.constant 0 : i32
    %c0_i32_1 = arith.constant 0 : i32
    return %c0_i32, %c0_i32_0 : i32, i32
  }
  func.func @transform_3(%arg0: i32) -> i32 {
    %c0_i32 = arith.constant 0 : i32
    %c0_i32_0 = arith.constant 0 : i32
    return %c0_i32 : i32
  }
  func.func @transform_4(%arg0: i32) -> (i32, i32, i32, i32) {
    %c0_i32 = arith.constant 0 : i32
    %c0_i32_0 = arith.constant 0 : i32
    %c0_i32_1 = arith.constant 0 : i32
    %c0_i32_2 = arith.constant 0 : i32
    return %arg0, %c0_i32, %c0_i32_0, %c0_i32_1 : i32, i32, i32, i32
  }
}

</mosaic_0001>

<llo_original>
// kernel: _csc_call.1
$region0: #{_csc_call.1}
  #allocation0 [shape = 'u32[]', space=smem, size = 0x4, offset = 0x4, fixed_abs, tag = 'smem constant byte address 0x4 - core index']
  #allocation1 [shape = 'u32[144,128]{1,0:T(1,128)}', space=vmem, size = 0x12000, scoped, tag = 'internal scratch']
  %s0 = inlined_call_operand.hbm [shape: f32[2,4,16,16], index: 0, kind: input, shape index: {}]
  %s1 = inlined_call_operand.hbm [shape: f32[4,8], index: 1, kind: input, shape index: {}]
  %s2 = inlined_call_operand.hbm [shape: f32[4,8], index: 2, kind: input, shape index: {}]
  %s3 = inlined_call_operand.vmem [shape: f32[8], index: 3, kind: input, shape index: {}]
  %s4 = inlined_call_operand.vmem [shape: f32[2,8,14,14], index: 4, kind: output, shape index: {}]
  %s5 = sld [smem:[#allocation0]]
  $region65: #{_csc_call.1} parent=0
    _
  %s7 = ssub.s32 1, %s5
  %s8 = scalar_select 0, %s7, %s5
  $region1: #{_csc_call.1} parent=0
    #allocation2 [shape = 'u8[65536]{0}', space=vmem, size = 0x10000, scoped, tag = 'input window, operand 0']
    #allocation3 [shape = 's32[2]{0}', space=sflag, size = 0x8, scoped, tag = 'scoped memory for _csc_call.1']
    #allocation4 [shape = 's32[2]{0}', space=sflag, size = 0x8, scoped, tag = 'scoped memory for _csc_call.1']
    #allocation5 [shape = 's32[2]{0}', space=sflag, size = 0x8, scoped, tag = 'scoped memory for _csc_call.1']
    #allocation6 [shape = 'u8[2048]{0}', space=smem, size = 0x800, scoped, tag = 'input window, operand 1, single buffered']
    #allocation7 [shape = 'u8[2048]{0}', space=smem, size = 0x800, scoped, tag = 'input window, operand 2, single buffered']
    #allocation8 [shape = 's32[1]{0}', space=sflag, size = 0x4, scoped, tag = 'scoped memory for _csc_call.1']
    #allocation9 [shape = 'u8[512]{0}', space=smem, size = 0x200, scoped, tag = 'input window, operand 3, single buffered']
    %9 = vsyncpa [#allocation3], 0
    %s10 = scalar_lea.sflag [#allocation3], 1
    %11 = vsyncpa %s10, 0
    %12 = vsyncpa [#allocation4], 0
    %13 = vsyncpa [#allocation8], 0
    %14 = vsyncpa [#allocation5], 0
    loop: start=0, step=1, limit=4
    $region2: #{_csc_call.1} parent=1 // loop_pre_header
      _
    $region3: #{_csc_call.1} parent=1 // loop_header
      %s16 = sphi 0, %s20
      %p17 = scmp.ge.s32.totalorder %s16, 4
      %s26 = sphi 0, %s28
      %s29 = sphi 0, %s26
      %s30 = sphi 0, %s29
      %s46 = sphi 0, %s30
      %s50 = sphi 0, %s50
      %s52 = sphi 0, %s50
      %s53 = sphi 0, %s52
      %s67 = sphi 0, %s53
      %s71 = sphi 0, %s71
      %s73 = sphi 0, %s71
      %s74 = sphi 0, %s73
      %s88 = sphi 0, %s74
      %s92 = sphi 0, %s92
      %s94 = sphi 0, %s92
      %s95 = sphi 0, %s94
      %s109 = sphi 0, %s95
      %s115 = sphi 0, %s117
      %s118 = sphi 0, %s115
      %s119 = sphi 0, %s118
      %s135 = sphi 0, %s119
    $region4: #{_csc_call.1} parent=1 // loop_header_branch
      %19 = sbr.rel (%p17) target = $region8
    $region5: #{_csc_call.1} parent=1 // loop_body
      %s21 = ssub.s32 %s16, 1
      %s22 = ssub.s32 %s16, 2
      %s23 = sadd.s32 %s16, 1
      %s24 = ssub.s32 %s16, %s23
      %p25 = scmp.eq.s32.totalorder %s24, 0
      %s27 = sadd.s32 %s26, 1
      %s28 = scalar_select %p25, %s26, %s27
      %p31 = pneg %p25
      %p32 = scmp.eq.s32.totalorder %s16, 1
      %p33 = por %p31, %p32
      %p34 = scmp.ne.s32.totalorder %s26, %s29
      %p35 = scmp.eq.s32.totalorder %s16, 0
      %p36 = por %p34, %p35
      %p37 = scmp.ne.s32.totalorder %s26, %s29
      %p38 = scmp.eq.s32.totalorder %s21, 1
      %p39 = por %p37, %p38
      %p40 = scmp.ne.s32.totalorder %s29, %s30
      %p41 = scmp.eq.s32.totalorder %s21, 0
      %p42 = por %p40, %p41
      %p43 = scmp.ne.s32.totalorder %s29, %s30
      %p44 = scmp.eq.s32.totalorder %s22, 1
      %p45 = por %p43, %p44
      %p47 = scmp.ne.s32.totalorder %s30, %s46
      %p48 = scmp.eq.s32.totalorder %s22, 0
      %p49 = por %p47, %p48
      %s51 = sadd.s32 %s50, 1
      %p54 = scmp.eq.s32.totalorder %s16, 1
      %p55 = scmp.ne.s32.totalorder %s50, %s52
      %p56 = scmp.eq.s32.totalorder %s16, 0
      %p57 = por %p55, %p56
      %p58 = scmp.ne.s32.totalorder %s50, %s52
      %p59 = scmp.eq.s32.totalorder %s21, 1
      %p60 = por %p58, %p59
      %p61 = scmp.ne.s32.totalorder %s52, %s53
      %p62 = scmp.eq.s32.totalorder %s21, 0
      %p63 = por %p61, %p62
      %p64 = scmp.ne.s32.totalorder %s52, %s53
      %p65 = scmp.eq.s32.totalorder %s22, 1
      %p66 = por %p64, %p65
      %p68 = scmp.ne.s32.totalorder %s53, %s67
      %p69 = scmp.eq.s32.totalorder %s22, 0
      %p70 = por %p68, %p69
      %s72 = sadd.s32 %s71, 1
      %p75 = scmp.eq.s32.totalorder %s16, 1
      %p76 = scmp.ne.s32.totalorder %s71, %s73
      %p77 = scmp.eq.s32.totalorder %s16, 0
      %p78 = por %p76, %p77
      %p79 = scmp.ne.s32.totalorder %s71, %s73
      %p80 = scmp.eq.s32.totalorder %s21, 1
      %p81 = por %p79, %p80
      %p82 = scmp.ne.s32.totalorder %s73, %s74
      %p83 = scmp.eq.s32.totalorder %s21, 0
      %p84 = por %p82, %p83
      %p85 = scmp.ne.s32.totalorder %s73, %s74
      %p86 = scmp.eq.s32.totalorder %s22, 1
      %p87 = por %p85, %p86
      %p89 = scmp.ne.s32.totalorder %s74, %s88
      %p90 = scmp.eq.s32.totalorder %s22, 0
      %p91 = por %p89, %p90
      %s93 = sadd.s32 %s92, 1
      %p96 = scmp.eq.s32.totalorder %s16, 1
      %p97 = scmp.ne.s32.totalorder %s92, %s94
      %p98 = scmp.eq.s32.totalorder %s16, 0
      %p99 = por %p97, %p98
      %p100 = scmp.ne.s32.totalorder %s92, %s94
      %p101 = scmp.eq.s32.totalorder %s21, 1
      %p102 = por %p100, %p101
      %p103 = scmp.ne.s32.totalorder %s94, %s95
      %p104 = scmp.eq.s32.totalorder %s21, 0
      %p105 = por %p103, %p104
      %p106 = scmp.ne.s32.totalorder %s94, %s95
      %p107 = scmp.eq.s32.totalorder %s22, 1
      %p108 = por %p106, %p107
      %p110 = scmp.ne.s32.totalorder %s95, %s109
      %p111 = scmp.eq.s32.totalorder %s22, 0
      %p112 = por %p110, %p111
      %s113 = ssub.s32 %s16, %s23
      %p114 = scmp.eq.s32.totalorder %s113, 0
      %s116 = sadd.s32 %s115, 1
      %s117 = scalar_select %p114, %s115, %s116
      %p120 = pneg %p114
      %p121 = scmp.eq.s32.totalorder %s16, 1
      %p122 = por %p120, %p121
      %p123 = scmp.ne.s32.totalorder %s115, %s118
      %p124 = scmp.eq.s32.totalorder %s16, 0
      %p125 = por %p123, %p124
      %p126 = scmp.ne.s32.totalorder %s115, %s118
      %p127 = scmp.eq.s32.totalorder %s21, 1
      %p128 = por %p126, %p127
      %p129 = scmp.ne.s32.totalorder %s118, %s119
      %p130 = scmp.eq.s32.totalorder %s21, 0
      %p131 = por %p129, %p130
      %p132 = scmp.ne.s32.totalorder %s118, %s119
      %p133 = scmp.eq.s32.totalorder %s22, 1
      %p134 = por %p132, %p133
      %p136 = scmp.ne.s32.totalorder %s119, %s135
      %p137 = scmp.eq.s32.totalorder %s22, 0
      %p138 = por %p136, %p137
      %p139 = scmp.le.s32.totalorder 1, %s16
      %p140 = scmp.lt.s32.totalorder %s16, 3
      %p141 = pnand %p139, %p140
      %p142 = pneg %p141
      // Predicated region
      $region9: #{_csc_call.1} parent=5 // pred_check
        _
      $region10: #{_csc_call.1} parent=5 // pred_check_branch
        %144 = sbr.rel (%p141) target = $region12
      $region11: #{_csc_call.1} parent=5 // pred_region
        %s145 = ssub.s32 %s16, 1
        // Predicated region
        $region13: #{_csc_call.1} parent=11 // pred_check
          %p146 = pneg %p63
        $region14: #{_csc_call.1} parent=11 // pred_check_branch
          %148 = sbr.rel (%p146) target = $region16
        $region15: #{_csc_call.1} parent=11 // pred_region
          %s150 = ssub.s32 64, 64
          %151 = vsyncadd [#allocation4], %s150
          %154 = dma.hbm_to_smem %s1, 64, [#allocation6], [#allocation4]
        $region16: #{_csc_call.1} parent=11 // pred_fallthru
          _
        // Predicated region
        $region17: #{_csc_call.1} parent=11 // pred_check
          %p155 = pneg %p84
        $region18: #{_csc_call.1} parent=11 // pred_check_branch
          %157 = sbr.rel (%p155) target = $region20
        $region19: #{_csc_call.1} parent=11 // pred_region
          %s159 = ssub.s32 64, 64
          %160 = vsyncadd [#allocation8], %s159
          %163 = dma.hbm_to_smem %s2, 64, [#allocation7], [#allocation8]
        $region20: #{_csc_call.1} parent=11 // pred_fallthru
          _
        // Predicated region
        $region21: #{_csc_call.1} parent=11 // pred_check
          %p164 = pneg %p105
        $region22: #{_csc_call.1} parent=11 // pred_check_branch
          %166 = sbr.rel (%p164) target = $region24
        $region23: #{_csc_call.1} parent=11 // pred_region
          %s168 = ssub.s32 16, 16
          %169 = vsyncadd [#allocation5], %s168
          %s171 = sshll.u32 %s3, 4
          %s172 = int_to_ptr.vmem [resolvable:$true] %s171
          %174 = dma.vmem_to_smem %s172, 16, [#allocation9], [#allocation5]
        $region24: #{_csc_call.1} parent=11 // pred_fallthru
          _
      $region12: #{_csc_call.1} parent=5 // pred_fallthru
        _
      %p175 = scmp.lt.s32.totalorder %s16, 2
      // Predicated region
      $region25: #{_csc_call.1} parent=5 // pred_check
        %p176 = pneg %p175
      $region26: #{_csc_call.1} parent=5 // pred_check_branch
        %178 = sbr.rel (%p176) target = $region28
      $region27: #{_csc_call.1} parent=5 // pred_region
        // Predicated region
        $region29: #{_csc_call.1} parent=27 // pred_check
          %p179 = pneg %p36
        $region30: #{_csc_call.1} parent=27 // pred_check_branch
          %181 = sbr.rel (%p179) target = $region32
        $region31: #{_csc_call.1} parent=27 // pred_region
          %s182 = sand.u32 %s26, 1
          %s183 = scalar_lea.sflag [#allocation3], %s182
          %s184 = sand.u32 %s26, 1
          %s185 = smul.addr %s184, 64
          %s186 = scalar_lea.vmem [#allocation2], %s185
          %s188 = ssub.s32 1024, 1024
          %189 = vsyncadd %s183, %s188
          %s190 = smul.addr %s16, 8
          %s191 = smul.addr %s190, 128
          %s192 = scalar_lea.hbm %s0, %s191
          %s193 = sshll.u32 %s186, 4
          %s194 = int_to_ptr.vmem [resolvable:$true] %s193
          %199 = dma.hbm_to_vmem [thread:$0]  %s192, 1024, %s194, %s183, 128, 128, 8
        $region32: #{_csc_call.1} parent=27 // pred_fallthru
          _
      $region28: #{_csc_call.1} parent=5 // pred_fallthru
        _
      %p200 = scmp.le.s32.totalorder 1, %s16
      %p201 = scmp.lt.s32.totalorder %s16, 3
      %p202 = pnand %p200, %p201
      %p203 = pneg %p202
      // Predicated region
      $region33: #{_csc_call.1} parent=5 // pred_check
        _
      $region34: #{_csc_call.1} parent=5 // pred_check_branch
        %205 = sbr.rel (%p202) target = $region36
      $region35: #{_csc_call.1} parent=5 // pred_region
        %s206 = ssub.s32 %s16, 1
        %s207 = sand.u32 %s29, 1
        %s208 = scalar_lea.sflag [#allocation3], %s207
        %s209 = sand.u32 %s29, 1
        %s210 = smul.addr %s209, 64
        %s211 = scalar_lea.vmem [#allocation2], %s210
        // Predicated region
        $region37: #{_csc_call.1} parent=35 // pred_check
          %p212 = pneg %p42
        $region38: #{_csc_call.1} parent=35 // pred_check_branch
          %214 = sbr.rel (%p212) target = $region40
        $region39: #{_csc_call.1} parent=35 // pred_region
          %215 = dma.done %s208, 1024
        $region40: #{_csc_call.1} parent=35 // pred_fallthru
          _
        // Predicated region
        $region41: #{_csc_call.1} parent=35 // pred_check
          %p216 = pneg %p63
        $region42: #{_csc_call.1} parent=35 // pred_check_branch
          %218 = sbr.rel (%p216) target = $region44
        $region43: #{_csc_call.1} parent=35 // pred_region
          %219 = dma.done [#allocation4], 64
        $region44: #{_csc_call.1} parent=35 // pred_fallthru
          _
        // Predicated region
        $region45: #{_csc_call.1} parent=35 // pred_check
          %p220 = pneg %p84
        $region46: #{_csc_call.1} parent=35 // pred_check_branch
          %222 = sbr.rel (%p220) target = $region48
        $region47: #{_csc_call.1} parent=35 // pred_region
          %223 = dma.done [#allocation8], 64
        $region48: #{_csc_call.1} parent=35 // pred_fallthru
          _
        // Predicated region
        $region49: #{_csc_call.1} parent=35 // pred_check
          %p224 = pneg %p105
        $region50: #{_csc_call.1} parent=35 // pred_check_branch
          %226 = sbr.rel (%p224) target = $region52
        $region51: #{_csc_call.1} parent=35 // pred_region
          %227 = dma.done [#allocation5], 16
        $region52: #{_csc_call.1} parent=35 // pred_fallthru
          _
        %228 = sfence
        %s229 = sand.u32 %s29, 1
        %s230 = scalar_lea.sflag [#allocation3], %s229
        %s231 = sand.u32 %s29, 1
        %s232 = smul.addr %s231, 64
        %s233 = scalar_lea.vmem [#allocation2], %s232
        %p234 = pneg %p42
        %p235 = pneg %p39
        %p236 = pneg %p63
        %p237 = pneg %p60
        %p238 = pneg %p84
        %p239 = pneg %p81
        %p240 = pneg %p105
        %p241 = pneg %p102
        %p242 = pneg %p131
        %p243 = pneg %p128
        %p244 = scmp.lt.s32.totalorder %s21, 1
        %s245 = scalar_select %p244, %s21, 1
        %s246 = smul.addr %s245, 16
        %s247 = smul.addr %s246, 8
        %s248 = scalar_lea.vmem %s4, %s247
        %p249 = scmp.lt.s32.totalorder %s21, 1
        %s250 = scalar_select %p249, %s21, 1
        %s251 = smul.addr %s250, 16
        %s252 = smul.addr %s251, 8
        %s253 = scalar_lea.vmem %s4, %s252
        %v254 = vld [vmem:[%s211] sm:$0xff]
        %v255 = vld [vmem:[%s211 + $0x8] sm:$0xff]
        %v256 = vld [vmem:[%s211 + $0x10] sm:$0xff]
        %v257 = vld [vmem:[%s211 + $0x18] sm:$0xff]
        %v258 = vld [vmem:[%s211 + $0x20] sm:$0xff]
        %v259 = vld [vmem:[%s211 + $0x28] sm:$0xff]
        %v260 = vld [vmem:[%s211 + $0x30] sm:$0xff]
        %v261 = vld [vmem:[%s211 + $0x38] sm:$0xff]
        %vm270 = vcmask 1046528
        %v271 = vrot.slane %v254, 1
        %v272 = vrot.slane %v255, 1
        %v273 = vsel %vm270, %v271, %v272
        %v274 = vrot.slane %v256, 1
        %v275 = vrot.slane %v257, 1
        %v276 = vsel %vm270, %v274, %v275
        %v277 = vrot.slane %v258, 1
        %v278 = vrot.slane %v259, 1
        %v279 = vsel %vm270, %v277, %v278
        %v280 = vrot.slane %v260, 1
        %v281 = vrot.slane %v261, 1
        %v282 = vsel %vm270, %v280, %v281
        %v291 = vadd.f32 %v254, %v273
        %v292 = vadd.f32 %v255, %v272
        %v293 = vadd.f32 %v256, %v276
        %v294 = vadd.f32 %v257, %v275
        %v295 = vadd.f32 %v258, %v279
        %v296 = vadd.f32 %v259, %v278
        %v297 = vadd.f32 %v260, %v282
        %v298 = vadd.f32 %v261, %v281
        %vm299 = vcmask 1045504
        %v300 = vrot.slane %v254, 2
        %v301 = vrot.slane %v255, 2
        %v302 = vsel %vm299, %v300, %v301
        %v303 = vrot.slane %v256, 2
        %v304 = vrot.slane %v257, 2
        %v305 = vsel %vm299, %v303, %v304
        %v306 = vrot.slane %v258, 2
        %v307 = vrot.slane %v259, 2
        %v308 = vsel %vm299, %v306, %v307
        %v309 = vrot.slane %v260, 2
        %v310 = vrot.slane %v261, 2
        %v311 = vsel %vm299, %v309, %v310
        %v320 = vadd.f32 %v291, %v302
        %v321 = vadd.f32 %v292, %v301
        %v322 = vadd.f32 %v293, %v305
        %v323 = vadd.f32 %v294, %v304
        %v324 = vadd.f32 %v295, %v308
        %v325 = vadd.f32 %v296, %v307
        %v326 = vadd.f32 %v297, %v311
        %v327 = vadd.f32 %v298, %v310
        %336 = vrot.lane.b32.xlu0 %v320, 127
        %v337 = vpop.permute.xlu0 %336
        %338 = vrot.lane.b32.xlu0 %v321, 127
        %v339 = vpop.permute.xlu0 %338
        %340 = vrot.lane.b32.xlu0 %v322, 127
        %v341 = vpop.permute.xlu0 %340
        %342 = vrot.lane.b32.xlu0 %v323, 127
        %v343 = vpop.permute.xlu0 %342
        %344 = vrot.lane.b32.xlu0 %v324, 127
        %v345 = vpop.permute.xlu0 %344
        %346 = vrot.lane.b32.xlu0 %v325, 127
        %v347 = vpop.permute.xlu0 %346
        %348 = vrot.lane.b32.xlu0 %v326, 127
        %v349 = vpop.permute.xlu0 %348
        %350 = vrot.lane.b32.xlu0 %v327, 127
        %v351 = vpop.permute.xlu0 %350
        %v360 = vadd.f32 %v320, %v337
        %v361 = vadd.f32 %v321, %v339
        %v362 = vadd.f32 %v322, %v341
        %v363 = vadd.f32 %v323, %v343
        %v364 = vadd.f32 %v324, %v345
        %v365 = vadd.f32 %v325, %v347
        %v366 = vadd.f32 %v326, %v349
        %v367 = vadd.f32 %v327, %v351
        %368 = vrot.lane.b32.xlu0 %v320, 126
        %v369 = vpop.permute.xlu0 %368
        %370 = vrot.lane.b32.xlu0 %v321, 126
        %v371 = vpop.permute.xlu0 %370
        %372 = vrot.lane.b32.xlu0 %v322, 126
        %v373 = vpop.permute.xlu0 %372
        %374 = vrot.lane.b32.xlu0 %v323, 126
        %v375 = vpop.permute.xlu0 %374
        %376 = vrot.lane.b32.xlu0 %v324, 126
        %v377 = vpop.permute.xlu0 %376
        %378 = vrot.lane.b32.xlu0 %v325, 126
        %v379 = vpop.permute.xlu0 %378
        %380 = vrot.lane.b32.xlu0 %v326, 126
        %v381 = vpop.permute.xlu0 %380
        %382 = vrot.lane.b32.xlu0 %v327, 126
        %v383 = vpop.permute.xlu0 %382
        %v392 = vadd.f32 %v360, %v369
        %v393 = vadd.f32 %v361, %v371
        %v394 = vadd.f32 %v362, %v373
        %v395 = vadd.f32 %v363, %v375
        %v396 = vadd.f32 %v364, %v377
        %v397 = vadd.f32 %v365, %v379
        %v398 = vadd.f32 %v366, %v381
        %v399 = vadd.f32 %v367, %v383
        %s400 = sld [smem:[#allocation6]]
        %v401 = vstv %s400
        %v402 = vmul.f32 %v254, %v401
        %v403 = vmul.f32 %v255, %v401
        %s404 = sld [smem:[#allocation7]]
        %v405 = vstv %s404
        %v406 = vmul.f32 %v392, %v405
        %v407 = vmul.f32 %v393, %v405
        %vm410 = vcmask 1040384
        %v411 = vrot.slane %v406, 7
        %v412 = vrot.slane %v407, 7
        %v413 = vsel %vm410, %v411, %v412
        %414 = vrot.lane.b32.xlu0 %v411, 1
        %v415 = vpop.permute.xlu0 %414
        %416 = vrot.lane.b32.xlu0 %v413, 1
        %v417 = vpop.permute.xlu0 %416
        %v420 = vadd.f32 %v402, %v415
        %v421 = vadd.f32 %v403, %v417
        %s422 = sld [smem:[#allocation6 + $0x80]]
        %v423 = vstv %s422
        %v424 = vmul.f32 %v256, %v423
        %v425 = vmul.f32 %v257, %v423
        %v426 = vadd.f32 %v420, %v424
        %v427 = vadd.f32 %v421, %v425
        %s428 = sld [smem:[#allocation7 + $0x80]]
        %v429 = vstv %s428
        %v430 = vmul.f32 %v394, %v429
        %v431 = vmul.f32 %v395, %v429
        %v434 = vrot.slane %v430, 7
        %v435 = vrot.slane %v431, 7
        %v436 = vsel %vm410, %v434, %v435
        %437 = vrot.lane.b32.xlu0 %v434, 1
        %v438 = vpop.permute.xlu0 %437
        %439 = vrot.lane.b32.xlu0 %v436, 1
        %v440 = vpop.permute.xlu0 %439
        %v443 = vadd.f32 %v426, %v438
        %v444 = vadd.f32 %v427, %v440
        %s445 = sld [smem:[#allocation6 + $0x100]]
        %v446 = vstv %s445
        %v447 = vmul.f32 %v258, %v446
        %v448 = vmul.f32 %v259, %v446
        %v449 = vadd.f32 %v443, %v447
        %v450 = vadd.f32 %v444, %v448
        %s451 = sld [smem:[#allocation7 + $0x100]]
        %v452 = vstv %s451
        %v453 = vmul.f32 %v396, %v452
        %v454 = vmul.f32 %v397, %v452
        %v457 = vrot.slane %v453, 7
        %v458 = vrot.slane %v454, 7
        %v459 = vsel %vm410, %v457, %v458
        %460 = vrot.lane.b32.xlu0 %v457, 1
        %v461 = vpop.permute.xlu0 %460
        %462 = vrot.lane.b32.xlu0 %v459, 1
        %v463 = vpop.permute.xlu0 %462
        %v466 = vadd.f32 %v449, %v461
        %v467 = vadd.f32 %v450, %v463
        %s468 = sld [smem:[#allocation6 + $0x180]]
        %v469 = vstv %s468
        %v470 = vmul.f32 %v260, %v469
        %v471 = vmul.f32 %v261, %v469
        %v472 = vadd.f32 %v466, %v470
        %v473 = vadd.f32 %v467, %v471
        %s474 = sld [smem:[#allocation7 + $0x180]]
        %v475 = vstv %s474
        %v476 = vmul.f32 %v398, %v475
        %v477 = vmul.f32 %v399, %v475
        %v480 = vrot.slane %v476, 7
        %v481 = vrot.slane %v477, 7
        %v482 = vsel %vm410, %v480, %v481
        %483 = vrot.lane.b32.xlu0 %v480, 1
        %v484 = vpop.permute.xlu0 %483
        %485 = vrot.lane.b32.xlu0 %v482, 1
        %v486 = vpop.permute.xlu0 %485
        %v489 = vadd.f32 %v472, %v484
        %v490 = vadd.f32 %v473, %v486
        %s491 = sld [smem:[#allocation9]]
        %v492 = vstv %s491
        %v493 = vadd.f32 %v489, %v492
        %v494 = vadd.f32 %v490, %v492
        %497 = vrot.lane.b32.xlu0 %v493, 127
        %v498 = vpop.permute.xlu0 %497
        %499 = vrot.lane.b32.xlu0 %v494, 127
        %v500 = vpop.permute.xlu0 %499
        %vm503 = vcmask 113665
        %504 = vst.msk [vmem:[%s253 - $0x1] sm:$0xfe] %vm503, %v498
        %vm505 = vcmask 112640
        %506 = vst.msk [vmem:[%s253 + $0x7] sm:$0x7f] %vm505, %v500
        %s507 = sld [smem:[#allocation6 + $0x1]]
        %v508 = vstv %s507
        %v509 = vmul.f32 %v254, %v508
        %v510 = vmul.f32 %v255, %v508
        %s511 = sld [smem:[#allocation7 + $0x1]]
        %v512 = vstv %s511
        %v513 = vmul.f32 %v392, %v512
        %v514 = vmul.f32 %v393, %v512
        %v517 = vrot.slane %v513, 7
        %v518 = vrot.slane %v514, 7
        %v519 = vsel %vm410, %v517, %v518
        %520 = vrot.lane.b32.xlu0 %v517, 1
        %v521 = vpop.permute.xlu0 %520
        %522 = vrot.lane.b32.xlu0 %v519, 1
        %v523 = vpop.permute.xlu0 %522
        %v526 = vadd.f32 %v509, %v521
        %v527 = vadd.f32 %v510, %v523
        %s528 = sld [smem:[#allocation6 + $0x81]]
        %v529 = vstv %s528
        %v530 = vmul.f32 %v256, %v529
        %v531 = vmul.f32 %v257, %v529
        %v532 = vadd.f32 %v526, %v530
        %v533 = vadd.f32 %v527, %v531
        %s534 = sld [smem:[#allocation7 + $0x81]]
        %v535 = vstv %s534
        %v536 = vmul.f32 %v394, %v535
        %v537 = vmul.f32 %v395, %v535
        %v540 = vrot.slane %v536, 7
        %v541 = vrot.slane %v537, 7
        %v542 = vsel %vm410, %v540, %v541
        %543 = vrot.lane.b32.xlu0 %v540, 1
        %v544 = vpop.permute.xlu0 %543
        %545 = vrot.lane.b32.xlu0 %v542, 1
        %v546 = vpop.permute.xlu0 %545
        %v549 = vadd.f32 %v532, %v544
        %v550 = vadd.f32 %v533, %v546
        %s551 = sld [smem:[#allocation6 + $0x101]]
        %v552 = vstv %s551
        %v553 = vmul.f32 %v258, %v552
        %v554 = vmul.f32 %v259, %v552
        %v555 = vadd.f32 %v549, %v553
        %v556 = vadd.f32 %v550, %v554
        %s557 = sld [smem:[#allocation7 + $0x101]]
        %v558 = vstv %s557
        %v559 = vmul.f32 %v396, %v558
        %v560 = vmul.f32 %v397, %v558
        %v563 = vrot.slane %v559, 7
        %v564 = vrot.slane %v560, 7
        %v565 = vsel %vm410, %v563, %v564
        %566 = vrot.lane.b32.xlu0 %v563, 1
        %v567 = vpop.permute.xlu0 %566
        %568 = vrot.lane.b32.xlu0 %v565, 1
        %v569 = vpop.permute.xlu0 %568
        %v572 = vadd.f32 %v555, %v567
        %v573 = vadd.f32 %v556, %v569
        %s574 = sld [smem:[#allocation6 + $0x181]]
        %v575 = vstv %s574
        %v576 = vmul.f32 %v260, %v575
        %v577 = vmul.f32 %v261, %v575
        %v578 = vadd.f32 %v572, %v576
        %v579 = vadd.f32 %v573, %v577
        %s580 = sld [smem:[#allocation7 + $0x181]]
        %v581 = vstv %s580
        %v582 = vmul.f32 %v398, %v581
        %v583 = vmul.f32 %v399, %v581
        %v586 = vrot.slane %v582, 7
        %v587 = vrot.slane %v583, 7
        %v588 = vsel %vm410, %v586, %v587
        %589 = vrot.lane.b32.xlu0 %v586, 1
        %v590 = vpop.permute.xlu0 %589
        %591 = vrot.lane.b32.xlu0 %v588, 1
        %v592 = vpop.permute.xlu0 %591
        %v595 = vadd.f32 %v578, %v590
        %v596 = vadd.f32 %v579, %v592
        %s597 = sld [smem:[#allocation9 + $0x1]]
        %v598 = vstv %s597
        %v599 = vadd.f32 %v595, %v598
        %v600 = vadd.f32 %v596, %v598
        %603 = vrot.lane.b32.xlu0 %v599, 127
        %v604 = vpop.permute.xlu0 %603
        %605 = vrot.lane.b32.xlu0 %v600, 127
        %v606 = vpop.permute.xlu0 %605
        %s609 = scalar_lea.vmem %s253, 16
        %610 = vst.msk [vmem:[%s609 - $0x1] sm:$0xfe] %vm503, %v604
        %611 = vst.msk [vmem:[%s609 + $0x7] sm:$0x7f] %vm505, %v606
        %s612 = sld [smem:[#allocation6 + $0x2]]
        %v613 = vstv %s612
        %v614 = vmul.f32 %v254, %v613
        %v615 = vmul.f32 %v255, %v613
        %s616 = sld [smem:[#allocation7 + $0x2]]
        %v617 = vstv %s616
        %v618 = vmul.f32 %v392, %v617
        %v619 = vmul.f32 %v393, %v617
        %v622 = vrot.slane %v618, 7
        %v623 = vrot.slane %v619, 7
        %v624 = vsel %vm410, %v622, %v623
        %625 = vrot.lane.b32.xlu0 %v622, 1
        %v626 = vpop.permute.xlu0 %625
        %627 = vrot.lane.b32.xlu0 %v624, 1
        %v628 = vpop.permute.xlu0 %627
        %v631 = vadd.f32 %v614, %v626
        %v632 = vadd.f32 %v615, %v628
        %s633 = sld [smem:[#allocation6 + $0x82]]
        %v634 = vstv %s633
        %v635 = vmul.f32 %v256, %v634
        %v636 = vmul.f32 %v257, %v634
        %v637 = vadd.f32 %v631, %v635
        %v638 = vadd.f32 %v632, %v636
        %s639 = sld [smem:[#allocation7 + $0x82]]
        %v640 = vstv %s639
        %v641 = vmul.f32 %v394, %v640
        %v642 = vmul.f32 %v395, %v640
        %v645 = vrot.slane %v641, 7
        %v646 = vrot.slane %v642, 7
        %v647 = vsel %vm410, %v645, %v646
        %648 = vrot.lane.b32.xlu0 %v645, 1
        %v649 = vpop.permute.xlu0 %648
        %650 = vrot.lane.b32.xlu0 %v647, 1
        %v651 = vpop.permute.xlu0 %650
        %v654 = vadd.f32 %v637, %v649
        %v655 = vadd.f32 %v638, %v651
        %s656 = sld [smem:[#allocation6 + $0x102]]
        %v657 = vstv %s656
        %v658 = vmul.f32 %v258, %v657
        %v659 = vmul.f32 %v259, %v657
        %v660 = vadd.f32 %v654, %v658
        %v661 = vadd.f32 %v655, %v659
        %s662 = sld [smem:[#allocation7 + $0x102]]
        %v663 = vstv %s662
        %v664 = vmul.f32 %v396, %v663
        %v665 = vmul.f32 %v397, %v663
        %v668 = vrot.slane %v664, 7
        %v669 = vrot.slane %v665, 7
        %v670 = vsel %vm410, %v668, %v669
        %671 = vrot.lane.b32.xlu0 %v668, 1
        %v672 = vpop.permute.xlu0 %671
        %673 = vrot.lane.b32.xlu0 %v670, 1
        %v674 = vpop.permute.xlu0 %673
        %v677 = vadd.f32 %v660, %v672
        %v678 = vadd.f32 %v661, %v674
        %s679 = sld [smem:[#allocation6 + $0x182]]
        %v680 = vstv %s679
        %v681 = vmul.f32 %v260, %v680
        %v682 = vmul.f32 %v261, %v680
        %v683 = vadd.f32 %v677, %v681
        %v684 = vadd.f32 %v678, %v682
        %s685 = sld [smem:[#allocation7 + $0x182]]
        %v686 = vstv %s685
        %v687 = vmul.f32 %v398, %v686
        %v688 = vmul.f32 %v399, %v686
        %v691 = vrot.slane %v687, 7
        %v692 = vrot.slane %v688, 7
        %v693 = vsel %vm410, %v691, %v692
        %694 = vrot.lane.b32.xlu0 %v691, 1
        %v695 = vpop.permute.xlu0 %694
        %696 = vrot.lane.b32.xlu0 %v693, 1
        %v697 = vpop.permute.xlu0 %696
        %v700 = vadd.f32 %v683, %v695
        %v701 = vadd.f32 %v684, %v697
        %s702 = sld [smem:[#allocation9 + $0x2]]
        %v703 = vstv %s702
        %v704 = vadd.f32 %v700, %v703
        %v705 = vadd.f32 %v701, %v703
        %708 = vrot.lane.b32.xlu0 %v704, 127
        %v709 = vpop.permute.xlu0 %708
        %710 = vrot.lane.b32.xlu0 %v705, 127
        %v711 = vpop.permute.xlu0 %710
        %s714 = scalar_lea.vmem %s253, 32
        %715 = vst.msk [vmem:[%s714 - $0x1] sm:$0xfe] %vm503, %v709
        %716 = vst.msk [vmem:[%s714 + $0x7] sm:$0x7f] %vm505, %v711
        %s717 = sld [smem:[#allocation6 + $0x3]]
        %v718 = vstv %s717
        %v719 = vmul.f32 %v254, %v718
        %v720 = vmul.f32 %v255, %v718
        %s721 = sld [smem:[#allocation7 + $0x3]]
        %v722 = vstv %s721
        %v723 = vmul.f32 %v392, %v722
        %v724 = vmul.f32 %v393, %v722
        %v727 = vrot.slane %v723, 7
        %v728 = vrot.slane %v724, 7
        %v729 = vsel %vm410, %v727, %v728
        %730 = vrot.lane.b32.xlu0 %v727, 1
        %v731 = vpop.permute.xlu0 %730
        %732 = vrot.lane.b32.xlu0 %v729, 1
        %v733 = vpop.permute.xlu0 %732
        %v736 = vadd.f32 %v719, %v731
        %v737 = vadd.f32 %v720, %v733
        %s738 = sld [smem:[#allocation6 + $0x83]]
        %v739 = vstv %s738
        %v740 = vmul.f32 %v256, %v739
        %v741 = vmul.f32 %v257, %v739
        %v742 = vadd.f32 %v736, %v740
        %v743 = vadd.f32 %v737, %v741
        %s744 = sld [smem:[#allocation7 + $0x83]]
        %v745 = vstv %s744
        %v746 = vmul.f32 %v394, %v745
        %v747 = vmul.f32 %v395, %v745
        %v750 = vrot.slane %v746, 7
        %v751 = vrot.slane %v747, 7
        %v752 = vsel %vm410, %v750, %v751
        %753 = vrot.lane.b32.xlu0 %v750, 1
        %v754 = vpop.permute.xlu0 %753
        %755 = vrot.lane.b32.xlu0 %v752, 1
        %v756 = vpop.permute.xlu0 %755
        %v759 = vadd.f32 %v742, %v754
        %v760 = vadd.f32 %v743, %v756
        %s761 = sld [smem:[#allocation6 + $0x103]]
        %v762 = vstv %s761
        %v763 = vmul.f32 %v258, %v762
        %v764 = vmul.f32 %v259, %v762
        %v765 = vadd.f32 %v759, %v763
        %v766 = vadd.f32 %v760, %v764
        %s767 = sld [smem:[#allocation7 + $0x103]]
        %v768 = vstv %s767
        %v769 = vmul.f32 %v396, %v768
        %v770 = vmul.f32 %v397, %v768
        %v773 = vrot.slane %v769, 7
        %v774 = vrot.slane %v770, 7
        %v775 = vsel %vm410, %v773, %v774
        %776 = vrot.lane.b32.xlu0 %v773, 1
        %v777 = vpop.permute.xlu0 %776
        %778 = vrot.lane.b32.xlu0 %v775, 1
        %v779 = vpop.permute.xlu0 %778
        %v782 = vadd.f32 %v765, %v777
        %v783 = vadd.f32 %v766, %v779
        %s784 = sld [smem:[#allocation6 + $0x183]]
        %v785 = vstv %s784
        %v786 = vmul.f32 %v260, %v785
        %v787 = vmul.f32 %v261, %v785
        %v788 = vadd.f32 %v782, %v786
        %v789 = vadd.f32 %v783, %v787
        %s790 = sld [smem:[#allocation7 + $0x183]]
        %v791 = vstv %s790
        %v792 = vmul.f32 %v398, %v791
        %v793 = vmul.f32 %v399, %v791
        %v796 = vrot.slane %v792, 7
        %v797 = vrot.slane %v793, 7
        %v798 = vsel %vm410, %v796, %v797
        %799 = vrot.lane.b32.xlu0 %v796, 1
        %v800 = vpop.permute.xlu0 %799
        %801 = vrot.lane.b32.xlu0 %v798, 1
        %v802 = vpop.permute.xlu0 %801
        %v805 = vadd.f32 %v788, %v800
        %v806 = vadd.f32 %v789, %v802
        %s807 = sld [smem:[#allocation9 + $0x3]]
        %v808 = vstv %s807
        %v809 = vadd.f32 %v805, %v808
        %v810 = vadd.f32 %v806, %v808
        %813 = vrot.lane.b32.xlu0 %v809, 127
        %v814 = vpop.permute.xlu0 %813
        %815 = vrot.lane.b32.xlu0 %v810, 127
        %v816 = vpop.permute.xlu0 %815
        %s819 = scalar_lea.vmem %s253, 48
        %820 = vst.msk [vmem:[%s819 - $0x1] sm:$0xfe] %vm503, %v814
        %821 = vst.msk [vmem:[%s819 + $0x7] sm:$0x7f] %vm505, %v816
        %s822 = sld [smem:[#allocation6 + $0x4]]
        %v823 = vstv %s822
        %v824 = vmul.f32 %v254, %v823
        %v825 = vmul.f32 %v255, %v823
        %s826 = sld [smem:[#allocation7 + $0x4]]
        %v827 = vstv %s826
        %v828 = vmul.f32 %v392, %v827
        %v829 = vmul.f32 %v393, %v827
        %v832 = vrot.slane %v828, 7
        %v833 = vrot.slane %v829, 7
        %v834 = vsel %vm410, %v832, %v833
        %835 = vrot.lane.b32.xlu0 %v832, 1
        %v836 = vpop.permute.xlu0 %835
        %837 = vrot.lane.b32.xlu0 %v834, 1
        %v838 = vpop.permute.xlu0 %837
        %v841 = vadd.f32 %v824, %v836
        %v842 = vadd.f32 %v825, %v838
        %s843 = sld [smem:[#allocation6 + $0x84]]
        %v844 = vstv %s843
        %v845 = vmul.f32 %v256, %v844
        %v846 = vmul.f32 %v257, %v844
        %v847 = vadd.f32 %v841, %v845
        %v848 = vadd.f32 %v842, %v846
        %s849 = sld [smem:[#allocation7 + $0x84]]
        %v850 = vstv %s849
        %v851 = vmul.f32 %v394, %v850
        %v852 = vmul.f32 %v395, %v850
        %v855 = vrot.slane %v851, 7
        %v856 = vrot.slane %v852, 7
        %v857 = vsel %vm410, %v855, %v856
        %858 = vrot.lane.b32.xlu0 %v855, 1
        %v859 = vpop.permute.xlu0 %858
        %860 = vrot.lane.b32.xlu0 %v857, 1
        %v861 = vpop.permute.xlu0 %860
        %v864 = vadd.f32 %v847, %v859
        %v865 = vadd.f32 %v848, %v861
        %s866 = sld [smem:[#allocation6 + $0x104]]
        %v867 = vstv %s866
        %v868 = vmul.f32 %v258, %v867
        %v869 = vmul.f32 %v259, %v867
        %v870 = vadd.f32 %v864, %v868
        %v871 = vadd.f32 %v865, %v869
        %s872 = sld [smem:[#allocation7 + $0x104]]
        %v873 = vstv %s872
        %v874 = vmul.f32 %v396, %v873
        %v875 = vmul.f32 %v397, %v873
        %v878 = vrot.slane %v874, 7
        %v879 = vrot.slane %v875, 7
        %v880 = vsel %vm410, %v878, %v879
        %881 = vrot.lane.b32.xlu0 %v878, 1
        %v882 = vpop.permute.xlu0 %881
        %883 = vrot.lane.b32.xlu0 %v880, 1
        %v884 = vpop.permute.xlu0 %883
        %v887 = vadd.f32 %v870, %v882
        %v888 = vadd.f32 %v871, %v884
        %s889 = sld [smem:[#allocation6 + $0x184]]
        %v890 = vstv %s889
        %v891 = vmul.f32 %v260, %v890
        %v892 = vmul.f32 %v261, %v890
        %v893 = vadd.f32 %v887, %v891
        %v894 = vadd.f32 %v888, %v892
        %s895 = sld [smem:[#allocation7 + $0x184]]
        %v896 = vstv %s895
        %v897 = vmul.f32 %v398, %v896
        %v898 = vmul.f32 %v399, %v896
        %v901 = vrot.slane %v897, 7
        %v902 = vrot.slane %v898, 7
        %v903 = vsel %vm410, %v901, %v902
        %904 = vrot.lane.b32.xlu0 %v901, 1
        %v905 = vpop.permute.xlu0 %904
        %906 = vrot.lane.b32.xlu0 %v903, 1
        %v907 = vpop.permute.xlu0 %906
        %v910 = vadd.f32 %v893, %v905
        %v911 = vadd.f32 %v894, %v907
        %s912 = sld [smem:[#allocation9 + $0x4]]
        %v913 = vstv %s912
        %v914 = vadd.f32 %v910, %v913
        %v915 = vadd.f32 %v911, %v913
        %918 = vrot.lane.b32.xlu0 %v914, 127
        %v919 = vpop.permute.xlu0 %918
        %920 = vrot.lane.b32.xlu0 %v915, 127
        %v921 = vpop.permute.xlu0 %920
        %s924 = scalar_lea.vmem %s253, 64
        %925 = vst.msk [vmem:[%s924 - $0x1] sm:$0xfe] %vm503, %v919
        %926 = vst.msk [vmem:[%s924 + $0x7] sm:$0x7f] %vm505, %v921
        %s927 = sld [smem:[#allocation6 + $0x5]]
        %v928 = vstv %s927
        %v929 = vmul.f32 %v254, %v928
        %v930 = vmul.f32 %v255, %v928
        %s931 = sld [smem:[#allocation7 + $0x5]]
        %v932 = vstv %s931
        %v933 = vmul.f32 %v392, %v932
        %v934 = vmul.f32 %v393, %v932
        %v937 = vrot.slane %v933, 7
        %v938 = vrot.slane %v934, 7
        %v939 = vsel %vm410, %v937, %v938
        %940 = vrot.lane.b32.xlu0 %v937, 1
        %v941 = vpop.permute.xlu0 %940
        %942 = vrot.lane.b32.xlu0 %v939, 1
        %v943 = vpop.permute.xlu0 %942
        %v946 = vadd.f32 %v929, %v941
        %v947 = vadd.f32 %v930, %v943
        %s948 = sld [smem:[#allocation6 + $0x85]]
        %v949 = vstv %s948
        %v950 = vmul.f32 %v256, %v949
        %v951 = vmul.f32 %v257, %v949
        %v952 = vadd.f32 %v946, %v950
        %v953 = vadd.f32 %v947, %v951
        %s954 = sld [smem:[#allocation7 + $0x85]]
        %v955 = vstv %s954
        %v956 = vmul.f32 %v394, %v955
        %v957 = vmul.f32 %v395, %v955
        %v960 = vrot.slane %v956, 7
        %v961 = vrot.slane %v957, 7
        %v962 = vsel %vm410, %v960, %v961
        %963 = vrot.lane.b32.xlu0 %v960, 1
        %v964 = vpop.permute.xlu0 %963
        %965 = vrot.lane.b32.xlu0 %v962, 1
        %v966 = vpop.permute.xlu0 %965
        %v969 = vadd.f32 %v952, %v964
        %v970 = vadd.f32 %v953, %v966
        %s971 = sld [smem:[#allocation6 + $0x105]]
        %v972 = vstv %s971
        %v973 = vmul.f32 %v258, %v972
        %v974 = vmul.f32 %v259, %v972
        %v975 = vadd.f32 %v969, %v973
        %v976 = vadd.f32 %v970, %v974
        %s977 = sld [smem:[#allocation7 + $0x105]]
        %v978 = vstv %s977
        %v979 = vmul.f32 %v396, %v978
        %v980 = vmul.f32 %v397, %v978
        %v983 = vrot.slane %v979, 7
        %v984 = vrot.slane %v980, 7
        %v985 = vsel %vm410, %v983, %v984
        %986 = vrot.lane.b32.xlu0 %v983, 1
        %v987 = vpop.permute.xlu0 %986
        %988 = vrot.lane.b32.xlu0 %v985, 1
        %v989 = vpop.permute.xlu0 %988
        %v992 = vadd.f32 %v975, %v987
        %v993 = vadd.f32 %v976, %v989
        %s994 = sld [smem:[#allocation6 + $0x185]]
        %v995 = vstv %s994
        %v996 = vmul.f32 %v260, %v995
        %v997 = vmul.f32 %v261, %v995
        %v998 = vadd.f32 %v992, %v996
        %v999 = vadd.f32 %v993, %v997
        %s1000 = sld [smem:[#allocation7 + $0x185]]
        %v1001 = vstv %s1000
        %v1002 = vmul.f32 %v398, %v1001
        %v1003 = vmul.f32 %v399, %v1001
        %v1006 = vrot.slane %v1002, 7
        %v1007 = vrot.slane %v1003, 7
        %v1008 = vsel %vm410, %v1006, %v1007
        %1009 = vrot.lane.b32.xlu0 %v1006, 1
        %v1010 = vpop.permute.xlu0 %1009
        %1011 = vrot.lane.b32.xlu0 %v1008, 1
        %v1012 = vpop.permute.xlu0 %1011
        %v1015 = vadd.f32 %v998, %v1010
        %v1016 = vadd.f32 %v999, %v1012
        %s1017 = sld [smem:[#allocation9 + $0x5]]
        %v1018 = vstv %s1017
        %v1019 = vadd.f32 %v1015, %v1018
        %v1020 = vadd.f32 %v1016, %v1018
        %1023 = vrot.lane.b32.xlu0 %v1019, 127
        %v1024 = vpop.permute.xlu0 %1023
        %1025 = vrot.lane.b32.xlu0 %v1020, 127
        %v1026 = vpop.permute.xlu0 %1025
        %s1029 = scalar_lea.vmem %s253, 80
        %1030 = vst.msk [vmem:[%s1029 - $0x1] sm:$0xfe] %vm503, %v1024
        %1031 = vst.msk [vmem:[%s1029 + $0x7] sm:$0x7f] %vm505, %v1026
        %s1032 = sld [smem:[#allocation6 + $0x6]]
        %v1033 = vstv %s1032
        %v1034 = vmul.f32 %v254, %v1033
        %v1035 = vmul.f32 %v255, %v1033
        %s1036 = sld [smem:[#allocation7 + $0x6]]
        %v1037 = vstv %s1036
        %v1038 = vmul.f32 %v392, %v1037
        %v1039 = vmul.f32 %v393, %v1037
        %v1042 = vrot.slane %v1038, 7
        %v1043 = vrot.slane %v1039, 7
        %v1044 = vsel %vm410, %v1042, %v1043
        %1045 = vrot.lane.b32.xlu0 %v1042, 1
        %v1046 = vpop.permute.xlu0 %1045
        %1047 = vrot.lane.b32.xlu0 %v1044, 1
        %v1048 = vpop.permute.xlu0 %1047
        %v1051 = vadd.f32 %v1034, %v1046
        %v1052 = vadd.f32 %v1035, %v1048
        %s1053 = sld [smem:[#allocation6 + $0x86]]
        %v1054 = vstv %s1053
        %v1055 = vmul.f32 %v256, %v1054
        %v1056 = vmul.f32 %v257, %v1054
        %v1057 = vadd.f32 %v1051, %v1055
        %v1058 = vadd.f32 %v1052, %v1056
        %s1059 = sld [smem:[#allocation7 + $0x86]]
        %v1060 = vstv %s1059
        %v1061 = vmul.f32 %v394, %v1060
        %v1062 = vmul.f32 %v395, %v1060
        %v1065 = vrot.slane %v1061, 7
        %v1066 = vrot.slane %v1062, 7
        %v1067 = vsel %vm410, %v1065, %v1066
        %1068 = vrot.lane.b32.xlu0 %v1065, 1
        %v1069 = vpop.permute.xlu0 %1068
        %1070 = vrot.lane.b32.xlu0 %v1067, 1
        %v1071 = vpop.permute.xlu0 %1070
        %v1074 = vadd.f32 %v1057, %v1069
        %v1075 = vadd.f32 %v1058, %v1071
        %s1076 = sld [smem:[#allocation6 + $0x106]]
        %v1077 = vstv %s1076
        %v1078 = vmul.f32 %v258, %v1077
        %v1079 = vmul.f32 %v259, %v1077
        %v1080 = vadd.f32 %v1074, %v1078
        %v1081 = vadd.f32 %v1075, %v1079
        %s1082 = sld [smem:[#allocation7 + $0x106]]
        %v1083 = vstv %s1082
        %v1084 = vmul.f32 %v396, %v1083
        %v1085 = vmul.f32 %v397, %v1083
        %v1088 = vrot.slane %v1084, 7
        %v1089 = vrot.slane %v1085, 7
        %v1090 = vsel %vm410, %v1088, %v1089
        %1091 = vrot.lane.b32.xlu0 %v1088, 1
        %v1092 = vpop.permute.xlu0 %1091
        %1093 = vrot.lane.b32.xlu0 %v1090, 1
        %v1094 = vpop.permute.xlu0 %1093
        %v1097 = vadd.f32 %v1080, %v1092
        %v1098 = vadd.f32 %v1081, %v1094
        %s1099 = sld [smem:[#allocation6 + $0x186]]
        %v1100 = vstv %s1099
        %v1101 = vmul.f32 %v260, %v1100
        %v1102 = vmul.f32 %v261, %v1100
        %v1103 = vadd.f32 %v1097, %v1101
        %v1104 = vadd.f32 %v1098, %v1102
        %s1105 = sld [smem:[#allocation7 + $0x186]]
        %v1106 = vstv %s1105
        %v1107 = vmul.f32 %v398, %v1106
        %v1108 = vmul.f32 %v399, %v1106
        %v1111 = vrot.slane %v1107, 7
        %v1112 = vrot.slane %v1108, 7
        %v1113 = vsel %vm410, %v1111, %v1112
        %1114 = vrot.lane.b32.xlu0 %v1111, 1
        %v1115 = vpop.permute.xlu0 %1114
        %1116 = vrot.lane.b32.xlu0 %v1113, 1
        %v1117 = vpop.permute.xlu0 %1116
        %v1120 = vadd.f32 %v1103, %v1115
        %v1121 = vadd.f32 %v1104, %v1117
        %s1122 = sld [smem:[#allocation9 + $0x6]]
        %v1123 = vstv %s1122
        %v1124 = vadd.f32 %v1120, %v1123
        %v1125 = vadd.f32 %v1121, %v1123
        %1128 = vrot.lane.b32.xlu0 %v1124, 127
        %v1129 = vpop.permute.xlu0 %1128
        %1130 = vrot.lane.b32.xlu0 %v1125, 127
        %v1131 = vpop.permute.xlu0 %1130
        %s1134 = scalar_lea.vmem %s253, 96
        %1135 = vst.msk [vmem:[%s1134 - $0x1] sm:$0xfe] %vm503, %v1129
        %1136 = vst.msk [vmem:[%s1134 + $0x7] sm:$0x7f] %vm505, %v1131
        %s1137 = sld [smem:[#allocation6 + $0x7]]
        %v1138 = vstv %s1137
        %v1139 = vmul.f32 %v254, %v1138
        %v1140 = vmul.f32 %v255, %v1138
        %s1141 = sld [smem:[#allocation7 + $0x7]]
        %v1142 = vstv %s1141
        %v1143 = vmul.f32 %v392, %v1142
        %v1144 = vmul.f32 %v393, %v1142
        %v1147 = vrot.slane %v1143, 7
        %v1148 = vrot.slane %v1144, 7
        %v1149 = vsel %vm410, %v1147, %v1148
        %1150 = vrot.lane.b32.xlu0 %v1147, 1
        %v1151 = vpop.permute.xlu0 %1150
        %1152 = vrot.lane.b32.xlu0 %v1149, 1
        %v1153 = vpop.permute.xlu0 %1152
        %v1156 = vadd.f32 %v1139, %v1151
        %v1157 = vadd.f32 %v1140, %v1153
        %s1158 = sld [smem:[#allocation6 + $0x87]]
        %v1159 = vstv %s1158
        %v1160 = vmul.f32 %v256, %v1159
        %v1161 = vmul.f32 %v257, %v1159
        %v1162 = vadd.f32 %v1156, %v1160
        %v1163 = vadd.f32 %v1157, %v1161
        %s1164 = sld [smem:[#allocation7 + $0x87]]
        %v1165 = vstv %s1164
        %v1166 = vmul.f32 %v394, %v1165
        %v1167 = vmul.f32 %v395, %v1165
        %v1170 = vrot.slane %v1166, 7
        %v1171 = vrot.slane %v1167, 7
        %v1172 = vsel %vm410, %v1170, %v1171
        %1173 = vrot.lane.b32.xlu0 %v1170, 1
        %v1174 = vpop.permute.xlu0 %1173
        %1175 = vrot.lane.b32.xlu0 %v1172, 1
        %v1176 = vpop.permute.xlu0 %1175
        %v1179 = vadd.f32 %v1162, %v1174
        %v1180 = vadd.f32 %v1163, %v1176
        %s1181 = sld [smem:[#allocation6 + $0x107]]
        %v1182 = vstv %s1181
        %v1183 = vmul.f32 %v258, %v1182
        %v1184 = vmul.f32 %v259, %v1182
        %v1185 = vadd.f32 %v1179, %v1183
        %v1186 = vadd.f32 %v1180, %v1184
        %s1187 = sld [smem:[#allocation7 + $0x107]]
        %v1188 = vstv %s1187
        %v1189 = vmul.f32 %v396, %v1188
        %v1190 = vmul.f32 %v397, %v1188
        %v1193 = vrot.slane %v1189, 7
        %v1194 = vrot.slane %v1190, 7
        %v1195 = vsel %vm410, %v1193, %v1194
        %1196 = vrot.lane.b32.xlu0 %v1193, 1
        %v1197 = vpop.permute.xlu0 %1196
        %1198 = vrot.lane.b32.xlu0 %v1195, 1
        %v1199 = vpop.permute.xlu0 %1198
        %v1202 = vadd.f32 %v1185, %v1197
        %v1203 = vadd.f32 %v1186, %v1199
        %s1204 = sld [smem:[#allocation6 + $0x187]]
        %v1205 = vstv %s1204
        %v1206 = vmul.f32 %v260, %v1205
        %v1207 = vmul.f32 %v261, %v1205
        %v1208 = vadd.f32 %v1202, %v1206
        %v1209 = vadd.f32 %v1203, %v1207
        %s1210 = sld [smem:[#allocation7 + $0x187]]
        %v1211 = vstv %s1210
        %v1212 = vmul.f32 %v398, %v1211
        %v1213 = vmul.f32 %v399, %v1211
        %v1216 = vrot.slane %v1212, 7
        %v1217 = vrot.slane %v1213, 7
        %v1218 = vsel %vm410, %v1216, %v1217
        %1219 = vrot.lane.b32.xlu0 %v1216, 1
        %v1220 = vpop.permute.xlu0 %1219
        %1221 = vrot.lane.b32.xlu0 %v1218, 1
        %v1222 = vpop.permute.xlu0 %1221
        %v1225 = vadd.f32 %v1208, %v1220
        %v1226 = vadd.f32 %v1209, %v1222
        %s1227 = sld [smem:[#allocation9 + $0x7]]
        %v1228 = vstv %s1227
        %v1229 = vadd.f32 %v1225, %v1228
        %v1230 = vadd.f32 %v1226, %v1228
        %1233 = vrot.lane.b32.xlu0 %v1229, 127
        %v1234 = vpop.permute.xlu0 %1233
        %1235 = vrot.lane.b32.xlu0 %v1230, 127
        %v1236 = vpop.permute.xlu0 %1235
        %s1239 = scalar_lea.vmem %s253, 112
        %1240 = vst.msk [vmem:[%s1239 - $0x1] sm:$0xfe] %vm503, %v1234
        %1241 = vst.msk [vmem:[%s1239 + $0x7] sm:$0x7f] %vm505, %v1236
        %p1242 = scmp.lt.s32.totalorder %s21, 1
        %s1243 = scalar_select %p1242, %s21, 1
        %s1244 = smul.addr %s1243, 16
        %s1245 = smul.addr %s1244, 8
        %s1246 = scalar_lea.vmem %s4, %s1245
        // Predicated region
        $region53: #{_csc_call.1} parent=35 // pred_check
          %p1247 = pneg %p128
        $region54: #{_csc_call.1} parent=35 // pred_check_branch
          %1249 = sbr.rel (%p1247) target = $region56
        $region55: #{_csc_call.1} parent=35 // pred_region
          _
        $region56: #{_csc_call.1} parent=35 // pred_fallthru
          _
      $region36: #{_csc_call.1} parent=5 // pred_fallthru
        _
      %p1250 = scmp.le.s32.totalorder 2, %s16
      // Predicated region
      $region57: #{_csc_call.1} parent=5 // pred_check
        %p1251 = pneg %p1250
      $region58: #{_csc_call.1} parent=5 // pred_check_branch
        %1253 = sbr.rel (%p1251) target = $region60
      $region59: #{_csc_call.1} parent=5 // pred_region
        %s1254 = ssub.s32 %s16, 2
        // Predicated region
        $region61: #{_csc_call.1} parent=59 // pred_check
          %p1255 = pneg %p134
        $region62: #{_csc_call.1} parent=59 // pred_check_branch
          %1257 = sbr.rel (%p1255) target = $region64
        $region63: #{_csc_call.1} parent=59 // pred_region
          %p1258 = scmp.lt.s32.totalorder %s22, 1
          %s1259 = scalar_select %p1258, %s22, 1
          %s1260 = smul.addr %s1259, 16
          %s1261 = smul.addr %s1260, 8
          %s1262 = scalar_lea.vmem %s4, %s1261
        $region64: #{_csc_call.1} parent=59 // pred_fallthru
          _
      $region60: #{_csc_call.1} parent=5 // pred_fallthru
        _
    $region6: #{_csc_call.1} parent=1 // loop_footer
      %s20 = sadd.s32 1, %s16
    $region7: #{_csc_call.1} parent=1 // loop_footer_branch
      %15 = sbr.rel target = $region3
    $region8: #{_csc_call.1} parent=1 // loop_exit
      _
    %1263 = vsyncpa [#allocation3], 1
    %s1264 = scalar_lea.sflag [#allocation3], 1
    %1265 = vsyncpa %s1264, 1
    %1266 = vsyncpa [#allocation4], 1
    %s1267 = scalar_lea.sflag [#allocation4], 1
    %1268 = vsyncpa %s1267, 1
    %1269 = vsyncpa [#allocation8], 1
    %1270 = vsyncpa [#allocation5], 1
    %s1271 = scalar_lea.sflag [#allocation5], 1
    %1272 = vsyncpa %s1271, 1

</llo_original>
